<compile_context>
chip_gen: v7x
topology: tpu7x:2x2x1
jax: 0.10.0
libtpu: 0.0.40
codegen_flags: <defaults>
</compile_context>

<pallas_src>
import jax
import jax.numpy as jnp
from jax.experimental import pallas as pl
from jax.experimental.pallas import tpu as pltpu

# ----------------------------- problem sizes -----------------------------
NUM_DRUGS = 4
NUM_TARGETS = 6
NUM_DISEASES = 4
NUM_ENT = NUM_DRUGS + NUM_TARGETS + NUM_DISEASES     # drugs, targets, diseases
NUM_REL = 3
INIT_DIM = 32
EMBED_DIM = 32
FEATURES_LENGTH = 48          # protein_go feature length
DISEASE_FEAT_DIM = 1024       # hard-coded 1024 in the reference module
BATCH = 8
NCAND = NUM_TARGETS + NUM_DISEASES
CAND_PAD = 128                # lane-dense padded candidate axis
LN_EPS = 1e-5
BN_EPS = 1e-5
_BN_INV_STD = float(1.0 / (1.0 + BN_EPS) ** 0.5)     # BN eval, fresh stats

_VMEM = lambda: pl.BlockSpec(memory_space=pltpu.MemorySpace.VMEM)


# ----------------------------- kernel helpers -----------------------------
def _layernorm(h, gamma, beta):
    mean = jnp.mean(h, axis=-1, keepdims=True)
    c = h - mean
    var = jnp.mean(c * c, axis=-1, keepdims=True)
    return c * jax.lax.rsqrt(var + LN_EPS) * gamma + beta


def _mlp_net(x, w1, b1, g1, be1, w2, b2, g2, be2):
    # MLPBlock(in, D): LayerNorm(ReLU(x @ W1 + b1))        (dropout = identity)
    # Residual(MLPBlock(D, D)): h + LayerNorm(ReLU(h @ W2 + b2))
    h = jnp.dot(x, w1, preferred_element_type=jnp.float32) + b1
    h = jnp.maximum(h, 0.0)
    h = _layernorm(h, g1, be1)
    r = jnp.dot(h, w2, preferred_element_type=jnp.float32) + b2
    r = jnp.maximum(r, 0.0)
    r = _layernorm(r, g2, be2)
    return h + r


def _placement(rows, cols, row_off=0, col_off=0):
    # P[i, j] = 1.0 iff (i + row_off) == (j + col_off); built with iota, no data.
    r = jax.lax.broadcasted_iota(jnp.int32, (rows, cols), 0)
    c = jax.lax.broadcasted_iota(jnp.int32, (rows, cols), 1)
    return ((r + row_off) == (c + col_off)).astype(jnp.float32)


# ------------------------------ fused kernel ------------------------------
def _tarikgc_kernel(
        subj_ref, rel_ref,
        w1_ref, w2_ref, w3_ref,
        init_embed_ref, bn_g_ref, bn_b_ref, init_rel_ref, mol_ref,
        protein_ref,
        tw1_ref, tb1_ref, tg1_ref, tbe1_ref, tw2_ref, tb2_ref, tg2_ref, tbe2_ref,
        dfeat_ref,
        dw1_ref, db1_ref, dg1_ref, dbe1_ref, dw2_ref, db2_ref, dg2_ref, dbe2_ref,
        bias_ref,
        x_ref, s_ref):
    f32 = jnp.float32
    b = subj_ref.shape[0]

    # ---- aggregate_emb (graph layers stubbed): BatchNorm1d eval on init_embed
    bn_scale = bn_g_ref[...] * _BN_INV_STD
    ent_emb = init_embed_ref[...] * bn_scale + bn_b_ref[...]          # (NUM_ENT, D)

    # ---- target_base / disease_base: MLP nets (the K=1024 matmul runs bf16 MXU)
    target_mlp = _mlp_net(protein_ref[...], tw1_ref[...], tb1_ref[...],
                          tg1_ref[...], tbe1_ref[...],
                          tw2_ref[...], tb2_ref[...],
                          tg2_ref[...], tbe2_ref[...])                # (NT, D)
    dis_mlp = _mlp_net(dfeat_ref[...], dw1_ref[...], db1_ref[...],
                       dg1_ref[...], dbe1_ref[...],
                       dw2_ref[...], db2_ref[...],
                       dg2_ref[...], dbe2_ref[...])                   # (ND, D)

    w1 = w1_ref[...]        # (1, 1) mixing weights
    w2 = w2_ref[...]
    w3 = w3_ref[...]

    # ---- emb_fusion over the full target / disease tables (one-hot MXU selects)
    sel_t = _placement(NUM_TARGETS, NUM_ENT, row_off=NUM_DRUGS)
    sel_d = _placement(NUM_DISEASES, NUM_ENT, row_off=NUM_DRUGS + NUM_TARGETS)
    target_topo = jnp.dot(sel_t, ent_emb, preferred_element_type=f32)
    disease_topo = jnp.dot(sel_d, ent_emb, preferred_element_type=f32)
    target_fused = w2 * target_topo + (1.0 - w2) * target_mlp         # (NT, D)
    disease_fused = w3 * disease_topo + (1.0 - w3) * dis_mlp          # (ND, D)

    # ---- subject / relation gathers: static-shape one-hot, no host indexing
    subj = subj_ref[...]                                              # (B, 1) i32
    rel = rel_ref[...]                                                # (B, 1) i32

    ent_iota = jax.lax.broadcasted_iota(jnp.int32, (b, NUM_ENT), 1)
    onehot_ent = (ent_iota == subj).astype(f32)                       # (B, NUM_ENT)
    drug_topo = jnp.dot(onehot_ent, ent_emb, preferred_element_type=f32)
    mol_emb = jnp.dot(onehot_ent, mol_ref[...], preferred_element_type=f32)
    drug_part = w1 * drug_topo + (1.0 - w1) * mol_emb                 # (B, D)

    t_iota = jax.lax.broadcasted_iota(jnp.int32, (b, NUM_TARGETS), 1)
    onehot_t = (t_iota == (subj - NUM_DRUGS)).astype(f32)
    target_part = jnp.dot(onehot_t, target_fused, preferred_element_type=f32)

    is_drug = (subj < NUM_DRUGS).astype(f32)                          # (B, 1)
    sub_emb = is_drug * drug_part + (1.0 - is_drug) * target_part     # (B, D)

    r_iota = jax.lax.broadcasted_iota(jnp.int32, (b, 2 * NUM_REL), 1)
    onehot_r = (r_iota == rel).astype(f32)
    rel_emb = jnp.dot(onehot_r, init_rel_ref[...], preferred_element_type=f32)

    # ---- scoring: obj = sub*rel ; x = obj @ cat(target, disease).T + bias
    obj = sub_emb * rel_emb                                           # (B, D)
    p_t = _placement(CAND_PAD, NUM_TARGETS)                           # rows 0..5
    p_d = _placement(CAND_PAD, NUM_DISEASES, col_off=NUM_TARGETS)     # rows 6..9
    cand_pad = (jnp.dot(p_t, target_fused, preferred_element_type=f32) +
                jnp.dot(p_d, disease_fused, preferred_element_type=f32))  # (128, D)

    x = jnp.dot(obj, cand_pad.T, preferred_element_type=f32)          # (B, 128)
    x = x + bias_ref[...]
    x_ref[...] = x                                                    # lane-dense store
    s_ref[...] = jax.nn.sigmoid(x)


# --------------------------- parameter construction ---------------------------
def _xavier_normal(key, shape):
    fan_out, fan_in = shape[0], shape[1]
    std = (2.0 / (fan_in + fan_out)) ** 0.5
    return jax.random.normal(key, shape, dtype=jnp.float32) * std


def make_params(key):
    ks = jax.random.split(key, 10)
    p = {}
    p["init_embed"] = _xavier_normal(ks[0], (NUM_ENT, INIT_DIM))
    p["init_rel"] = _xavier_normal(ks[1], (NUM_REL * 2, INIT_DIM))
    p["bn_gamma"] = jnp.ones((1, INIT_DIM), jnp.float32)
    p["bn_beta"] = jnp.zeros((1, INIT_DIM), jnp.float32)
    p["bias_pad"] = jnp.zeros((1, CAND_PAD), jnp.float32)   # reference init: zeros
    p["w1"] = jnp.full((1, 1), 0.5, jnp.float32)
    p["w2"] = jnp.full((1, 1), 0.5, jnp.float32)
    p["w3"] = jnp.full((1, 1), 0.5, jnp.float32)

    def mlp_net(k, in_feat, w1_dtype=jnp.float32):
        k1, k2, k3, k4 = jax.random.split(k, 4)
        # linear weights stored pre-transposed as (in, out) for lane-dense matmul
        return {
            "w1": _xavier_normal(k1, (EMBED_DIM, in_feat)).T.astype(w1_dtype),
            "b1": _xavier_normal(k2, (1, EMBED_DIM)) * 0.1,
            "g1": jnp.ones((1, EMBED_DIM), jnp.float32),
            "be1": jnp.zeros((1, EMBED_DIM), jnp.float32),
            "w2": _xavier_normal(k3, (EMBED_DIM, EMBED_DIM)).T,
            "b2": _xavier_normal(k4, (1, EMBED_DIM)) * 0.1,
            "g2": jnp.ones((1, EMBED_DIM), jnp.float32),
            "be2": jnp.zeros((1, EMBED_DIM), jnp.float32),
        }

    p["net"] = mlp_net(ks[2], FEATURES_LENGTH)                         # target net
    # disease net: K=1024 contraction with bf16 operands, f32 accumulation
    p["disease_net"] = mlp_net(ks[3], DISEASE_FEAT_DIM, w1_dtype=jnp.bfloat16)

    # fixed external features (buffers in the torch module)
    p["protein_go"] = jax.random.normal(ks[4], (NUM_TARGETS, FEATURES_LENGTH),
                                        dtype=jnp.float32)
    p["disease_feature"] = jax.random.normal(
        ks[5], (NUM_DISEASES, DISEASE_FEAT_DIM), dtype=jnp.float32).astype(jnp.bfloat16)
    p["disease_init_emb"] = _xavier_normal(ks[6], (NUM_DISEASES, INIT_DIM))  # parity only
    # TODO(synk): stand-in for Encoder + last_layer output of mol_base,
    #             padded to NUM_ENT rows so the in-kernel one-hot gather is static-shape.
    mol = _xavier_normal(ks[7], (NUM_DRUGS, INIT_DIM))
    p["mol_emb_table"] = jnp.concatenate(
        [mol, jnp.zeros((NUM_ENT - NUM_DRUGS, INIT_DIM), jnp.float32)], axis=0)
    return p


# --------------------------------- forward ---------------------------------
@jax.jit
def tarikgc_forward(params, subj, rel):
    b = subj.shape[0]
    net = params["net"]
    dnet = params["disease_net"]

    x_pad, s_pad = pl.pallas_call(
        _tarikgc_kernel,
        out_shape=(jax.ShapeDtypeStruct((b, CAND_PAD), jnp.float32),
                   jax.ShapeDtypeStruct((b, CAND_PAD), jnp.float32)),
        in_specs=[_VMEM()] * 29,
        out_specs=(_VMEM(), _VMEM()),
    )(subj.astype(jnp.int32).reshape(b, 1),
      rel.astype(jnp.int32).reshape(b, 1),
      params["w1"], params["w2"], params["w3"],
      params["init_embed"], params["bn_gamma"], params["bn_beta"],
      params["init_rel"], params["mol_emb_table"],
      params["protein_go"],
      net["w1"], net["b1"], net["g1"], net["be1"],
      net["w2"], net["b2"], net["g2"], net["be2"],
      params["disease_feature"],
      dnet["w1"], dnet["b1"], dnet["g1"], dnet["be1"],
      dnet["w2"], dnet["b2"], dnet["g2"], dnet["be2"],
      params["bias_pad"])

    x = x_pad[:, :NCAND]
    score = s_pad[:, :NCAND]
    return x, score


# ----------------------------------- main -----------------------------------
if __name__ == "__main__":
    key = jax.random.PRNGKey(0)
    pkey, rkey = jax.random.split(key)
    params = make_params(pkey)

    # subject entity ids: mix of drugs (< NUM_DRUGS) and targets (>= NUM_DRUGS)
    subj = jnp.array([0, 5, 2, 7, 1, 9, 3, 6], dtype=jnp.int32)
    rel = jax.random.randint(rkey, (BATCH,), 0, NUM_REL * 2, dtype=jnp.int32)

    x, score = tarikgc_forward(params, subj, rel)
    jax.block_until_ready((x, score))

    assert x.shape == (BATCH, NCAND)
    assert score.shape == (BATCH, NCAND)
    assert bool(jnp.all(jnp.isfinite(x)))
    assert bool(jnp.all((score >= 0.0) & (score <= 1.0)))
    print("KERNEL_OK")
</pallas_src>

<mosaic_0001>
module attributes {stable_mosaic.version = 11 : i64} {
  func.func @_tarikgc_kernel(%arg0: memref<8x1xi32, #tpu.memory_space<vmem>>, %arg1: memref<8x1xi32, #tpu.memory_space<vmem>>, %arg2: memref<1x1xf32, #tpu.memory_space<vmem>>, %arg3: memref<1x1xf32, #tpu.memory_space<vmem>>, %arg4: memref<1x1xf32, #tpu.memory_space<vmem>>, %arg5: memref<14x32xf32, #tpu.memory_space<vmem>>, %arg6: memref<1x32xf32, #tpu.memory_space<vmem>>, %arg7: memref<1x32xf32, #tpu.memory_space<vmem>>, %arg8: memref<6x32xf32, #tpu.memory_space<vmem>>, %arg9: memref<14x32xf32, #tpu.memory_space<vmem>>, %arg10: memref<6x48xf32, #tpu.memory_space<vmem>>, %arg11: memref<48x32xf32, #tpu.memory_space<vmem>>, %arg12: memref<1x32xf32, #tpu.memory_space<vmem>>, %arg13: memref<1x32xf32, #tpu.memory_space<vmem>>, %arg14: memref<1x32xf32, #tpu.memory_space<vmem>>, %arg15: memref<32x32xf32, #tpu.memory_space<vmem>>, %arg16: memref<1x32xf32, #tpu.memory_space<vmem>>, %arg17: memref<1x32xf32, #tpu.memory_space<vmem>>, %arg18: memref<1x32xf32, #tpu.memory_space<vmem>>, %arg19: memref<4x1024xbf16, #tpu.memory_space<vmem>>, %arg20: memref<1024x32xbf16, #tpu.memory_space<vmem>>, %arg21: memref<1x32xf32, #tpu.memory_space<vmem>>, %arg22: memref<1x32xf32, #tpu.memory_space<vmem>>, %arg23: memref<1x32xf32, #tpu.memory_space<vmem>>, %arg24: memref<32x32xf32, #tpu.memory_space<vmem>>, %arg25: memref<1x32xf32, #tpu.memory_space<vmem>>, %arg26: memref<1x32xf32, #tpu.memory_space<vmem>>, %arg27: memref<1x32xf32, #tpu.memory_space<vmem>>, %arg28: memref<1x128xf32, #tpu.memory_space<vmem>>, %arg29: memref<8x128xf32, #tpu.memory_space<vmem>>, %arg30: memref<8x128xf32, #tpu.memory_space<vmem>>) attributes {dimension_semantics = [], scalar_prefetch = 0 : i64, scratch_operands = 0 : i64, tpu.core_type = #tpu.core_type<tc>} {
    %c0 = arith.constant 0 : index
    %c0_0 = arith.constant 0 : index
    %0 = vector.load %arg6[%c0, %c0_0] : memref<1x32xf32, #tpu.memory_space<vmem>>, vector<1x32xf32>
    %cst = arith.constant 0.999994993 : f32
    %1 = vector.broadcast %cst : f32 to vector<1x32xf32>
    %2 = arith.mulf %0, %1 : vector<1x32xf32>
    %c0_1 = arith.constant 0 : index
    %c0_2 = arith.constant 0 : index
    %3 = vector.load %arg5[%c0_1, %c0_2] : memref<14x32xf32, #tpu.memory_space<vmem>>, vector<14x32xf32>
    %4 = vector.broadcast %2 : vector<1x32xf32> to vector<14x32xf32>
    %5 = arith.mulf %3, %4 : vector<14x32xf32>
    %c0_3 = arith.constant 0 : index
    %c0_4 = arith.constant 0 : index
    %6 = vector.load %arg7[%c0_3, %c0_4] : memref<1x32xf32, #tpu.memory_space<vmem>>, vector<1x32xf32>
    %7 = vector.broadcast %6 : vector<1x32xf32> to vector<14x32xf32>
    %8 = arith.addf %5, %7 : vector<14x32xf32>
    %c0_5 = arith.constant 0 : index
    %c0_6 = arith.constant 0 : index
    %9 = vector.load %arg10[%c0_5, %c0_6] : memref<6x48xf32, #tpu.memory_space<vmem>>, vector<6x48xf32>
    %c0_7 = arith.constant 0 : index
    %c0_8 = arith.constant 0 : index
    %10 = vector.load %arg11[%c0_7, %c0_8] : memref<48x32xf32, #tpu.memory_space<vmem>>, vector<48x32xf32>
    %c0_9 = arith.constant 0 : index
    %c0_10 = arith.constant 0 : index
    %11 = vector.load %arg12[%c0_9, %c0_10] : memref<1x32xf32, #tpu.memory_space<vmem>>, vector<1x32xf32>
    %c0_11 = arith.constant 0 : index
    %c0_12 = arith.constant 0 : index
    %12 = vector.load %arg13[%c0_11, %c0_12] : memref<1x32xf32, #tpu.memory_space<vmem>>, vector<1x32xf32>
    %c0_13 = arith.constant 0 : index
    %c0_14 = arith.constant 0 : index
    %13 = vector.load %arg14[%c0_13, %c0_14] : memref<1x32xf32, #tpu.memory_space<vmem>>, vector<1x32xf32>
    %c0_15 = arith.constant 0 : index
    %c0_16 = arith.constant 0 : index
    %14 = vector.load %arg15[%c0_15, %c0_16] : memref<32x32xf32, #tpu.memory_space<vmem>>, vector<32x32xf32>
    %c0_17 = arith.constant 0 : index
    %c0_18 = arith.constant 0 : index
    %15 = vector.load %arg16[%c0_17, %c0_18] : memref<1x32xf32, #tpu.memory_space<vmem>>, vector<1x32xf32>
    %c0_19 = arith.constant 0 : index
    %c0_20 = arith.constant 0 : index
    %16 = vector.load %arg17[%c0_19, %c0_20] : memref<1x32xf32, #tpu.memory_space<vmem>>, vector<1x32xf32>
    %c0_21 = arith.constant 0 : index
    %c0_22 = arith.constant 0 : index
    %17 = vector.load %arg18[%c0_21, %c0_22] : memref<1x32xf32, #tpu.memory_space<vmem>>, vector<1x32xf32>
    %cst_23 = arith.constant dense<0.000000e+00> : vector<6x32xf32>
    %18 = tpu.matmul %9, %10, %cst_23 {dimension_numbers = #tpu.dot_dimension_numbers<[1], [0], [0], [1], [0, 0, 1, 1], [], []>} : vector<6x48xf32>, vector<48x32xf32>, vector<6x32xf32> -> vector<6x32xf32>
    %19 = vector.broadcast %11 : vector<1x32xf32> to vector<6x32xf32>
    %20 = arith.addf %18, %19 : vector<6x32xf32>
    %cst_24 = arith.constant 0.000000e+00 : f32
    %21 = vector.broadcast %cst_24 : f32 to vector<6x32xf32>
    %22 = arith.maximumf %20, %21 : vector<6x32xf32>
    %cst_25 = arith.constant dense<0.000000e+00> : vector<6xf32>
    %23 = vector.multi_reduction <add>, %22, %cst_25 [1] : vector<6x32xf32> to vector<6xf32>
    %24 = vector.shape_cast %23 : vector<6xf32> to vector<6x1xf32>
    %cst_26 = arith.constant 3.200000e+01 : f32
    %25 = vector.broadcast %cst_26 : f32 to vector<6x1xf32>
    %26 = arith.divf %24, %25 : vector<6x1xf32>
    %27 = vector.broadcast %26 : vector<6x1xf32> to vector<6x32xf32>
    %28 = arith.subf %22, %27 : vector<6x32xf32>
    %29 = arith.mulf %28, %28 : vector<6x32xf32>
    %cst_27 = arith.constant dense<0.000000e+00> : vector<6xf32>
    %30 = vector.multi_reduction <add>, %29, %cst_27 [1] : vector<6x32xf32> to vector<6xf32>
    %31 = vector.shape_cast %30 : vector<6xf32> to vector<6x1xf32>
    %cst_28 = arith.constant 3.200000e+01 : f32
    %32 = vector.broadcast %cst_28 : f32 to vector<6x1xf32>
    %33 = arith.divf %31, %32 : vector<6x1xf32>
    %cst_29 = arith.constant 9.99999974E-6 : f32
    %34 = vector.broadcast %cst_29 : f32 to vector<6x1xf32>
    %35 = arith.addf %33, %34 : vector<6x1xf32>
    %36 = math.rsqrt %35 : vector<6x1xf32>
    %37 = vector.broadcast %36 : vector<6x1xf32> to vector<6x32xf32>
    %38 = arith.mulf %28, %37 : vector<6x32xf32>
    %39 = vector.broadcast %12 : vector<1x32xf32> to vector<6x32xf32>
    %40 = arith.mulf %38, %39 : vector<6x32xf32>
    %41 = vector.broadcast %13 : vector<1x32xf32> to vector<6x32xf32>
    %42 = arith.addf %40, %41 : vector<6x32xf32>
    %cst_30 = arith.constant dense<0.000000e+00> : vector<6x32xf32>
    %43 = tpu.matmul %42, %14, %cst_30 {dimension_numbers = #tpu.dot_dimension_numbers<[1], [0], [0], [1], [0, 0, 1, 1], [], []>} : vector<6x32xf32>, vector<32x32xf32>, vector<6x32xf32> -> vector<6x32xf32>
    %44 = vector.broadcast %15 : vector<1x32xf32> to vector<6x32xf32>
    %45 = arith.addf %43, %44 : vector<6x32xf32>
    %cst_31 = arith.constant 0.000000e+00 : f32
    %46 = vector.broadcast %cst_31 : f32 to vector<6x32xf32>
    %47 = arith.maximumf %45, %46 : vector<6x32xf32>
    %cst_32 = arith.constant dense<0.000000e+00> : vector<6xf32>
    %48 = vector.multi_reduction <add>, %47, %cst_32 [1] : vector<6x32xf32> to vector<6xf32>
    %49 = vector.shape_cast %48 : vector<6xf32> to vector<6x1xf32>
    %cst_33 = arith.constant 3.200000e+01 : f32
    %50 = vector.broadcast %cst_33 : f32 to vector<6x1xf32>
    %51 = arith.divf %49, %50 : vector<6x1xf32>
    %52 = vector.broadcast %51 : vector<6x1xf32> to vector<6x32xf32>
    %53 = arith.subf %47, %52 : vector<6x32xf32>
    %54 = arith.mulf %53, %53 : vector<6x32xf32>
    %cst_34 = arith.constant dense<0.000000e+00> : vector<6xf32>
    %55 = vector.multi_reduction <add>, %54, %cst_34 [1] : vector<6x32xf32> to vector<6xf32>
    %56 = vector.shape_cast %55 : vector<6xf32> to vector<6x1xf32>
    %cst_35 = arith.constant 3.200000e+01 : f32
    %57 = vector.broadcast %cst_35 : f32 to vector<6x1xf32>
    %58 = arith.divf %56, %57 : vector<6x1xf32>
    %cst_36 = arith.constant 9.99999974E-6 : f32
    %59 = vector.broadcast %cst_36 : f32 to vector<6x1xf32>
    %60 = arith.addf %58, %59 : vector<6x1xf32>
    %61 = math.rsqrt %60 : vector<6x1xf32>
    %62 = vector.broadcast %61 : vector<6x1xf32> to vector<6x32xf32>
    %63 = arith.mulf %53, %62 : vector<6x32xf32>
    %64 = vector.broadcast %16 : vector<1x32xf32> to vector<6x32xf32>
    %65 = arith.mulf %63, %64 : vector<6x32xf32>
    %66 = vector.broadcast %17 : vector<1x32xf32> to vector<6x32xf32>
    %67 = arith.addf %65, %66 : vector<6x32xf32>
    %68 = arith.addf %42, %67 : vector<6x32xf32>
    %c0_37 = arith.constant 0 : index
    %c0_38 = arith.constant 0 : index
    %69 = vector.load %arg19[%c0_37, %c0_38] : memref<4x1024xbf16, #tpu.memory_space<vmem>>, vector<4x1024xbf16>
    %c0_39 = arith.constant 0 : index
    %c0_40 = arith.constant 0 : index
    %70 = vector.load %arg20[%c0_39, %c0_40] : memref<1024x32xbf16, #tpu.memory_space<vmem>>, vector<1024x32xbf16>
    %c0_41 = arith.constant 0 : index
    %c0_42 = arith.constant 0 : index
    %71 = vector.load %arg21[%c0_41, %c0_42] : memref<1x32xf32, #tpu.memory_space<vmem>>, vector<1x32xf32>
    %c0_43 = arith.constant 0 : index
    %c0_44 = arith.constant 0 : index
    %72 = vector.load %arg22[%c0_43, %c0_44] : memref<1x32xf32, #tpu.memory_space<vmem>>, vector<1x32xf32>
    %c0_45 = arith.constant 0 : index
    %c0_46 = arith.constant 0 : index
    %73 = vector.load %arg23[%c0_45, %c0_46] : memref<1x32xf32, #tpu.memory_space<vmem>>, vector<1x32xf32>
    %c0_47 = arith.constant 0 : index
    %c0_48 = arith.constant 0 : index
    %74 = vector.load %arg24[%c0_47, %c0_48] : memref<32x32xf32, #tpu.memory_space<vmem>>, vector<32x32xf32>
    %c0_49 = arith.constant 0 : index
    %c0_50 = arith.constant 0 : index
    %75 = vector.load %arg25[%c0_49, %c0_50] : memref<1x32xf32, #tpu.memory_space<vmem>>, vector<1x32xf32>
    %c0_51 = arith.constant 0 : index
    %c0_52 = arith.constant 0 : index
    %76 = vector.load %arg26[%c0_51, %c0_52] : memref<1x32xf32, #tpu.memory_space<vmem>>, vector<1x32xf32>
    %c0_53 = arith.constant 0 : index
    %c0_54 = arith.constant 0 : index
    %77 = vector.load %arg27[%c0_53, %c0_54] : memref<1x32xf32, #tpu.memory_space<vmem>>, vector<1x32xf32>
    %cst_55 = arith.constant dense<0.000000e+00> : vector<4x32xf32>
    %78 = tpu.matmul %69, %70, %cst_55 {dimension_numbers = #tpu.dot_dimension_numbers<[1], [0], [0], [1], [0, 0, 1, 1], [], []>} : vector<4x1024xbf16>, vector<1024x32xbf16>, vector<4x32xf32> -> vector<4x32xf32>
    %79 = vector.broadcast %71 : vector<1x32xf32> to vector<4x32xf32>
    %80 = arith.addf %78, %79 : vector<4x32xf32>
    %cst_56 = arith.constant 0.000000e+00 : f32
    %81 = vector.broadcast %cst_56 : f32 to vector<4x32xf32>
    %82 = arith.maximumf %80, %81 : vector<4x32xf32>
    %cst_57 = arith.constant dense<0.000000e+00> : vector<4xf32>
    %83 = vector.multi_reduction <add>, %82, %cst_57 [1] : vector<4x32xf32> to vector<4xf32>
    %84 = vector.shape_cast %83 : vector<4xf32> to vector<4x1xf32>
    %cst_58 = arith.constant 3.200000e+01 : f32
    %85 = vector.broadcast %cst_58 : f32 to vector<4x1xf32>
    %86 = arith.divf %84, %85 : vector<4x1xf32>
    %87 = vector.broadcast %86 : vector<4x1xf32> to vector<4x32xf32>
    %88 = arith.subf %82, %87 : vector<4x32xf32>
    %89 = arith.mulf %88, %88 : vector<4x32xf32>
    %cst_59 = arith.constant dense<0.000000e+00> : vector<4xf32>
    %90 = vector.multi_reduction <add>, %89, %cst_59 [1] : vector<4x32xf32> to vector<4xf32>
    %91 = vector.shape_cast %90 : vector<4xf32> to vector<4x1xf32>
    %cst_60 = arith.constant 3.200000e+01 : f32
    %92 = vector.broadcast %cst_60 : f32 to vector<4x1xf32>
    %93 = arith.divf %91, %92 : vector<4x1xf32>
    %cst_61 = arith.constant 9.99999974E-6 : f32
    %94 = vector.broadcast %cst_61 : f32 to vector<4x1xf32>
    %95 = arith.addf %93, %94 : vector<4x1xf32>
    %96 = math.rsqrt %95 : vector<4x1xf32>
    %97 = vector.broadcast %96 : vector<4x1xf32> to vector<4x32xf32>
    %98 = arith.mulf %88, %97 : vector<4x32xf32>
    %99 = vector.broadcast %72 : vector<1x32xf32> to vector<4x32xf32>
    %100 = arith.mulf %98, %99 : vector<4x32xf32>
    %101 = vector.broadcast %73 : vector<1x32xf32> to vector<4x32xf32>
    %102 = arith.addf %100, %101 : vector<4x32xf32>
    %cst_62 = arith.constant dense<0.000000e+00> : vector<4x32xf32>
    %103 = tpu.matmul %102, %74, %cst_62 {dimension_numbers = #tpu.dot_dimension_numbers<[1], [0], [0], [1], [0, 0, 1, 1], [], []>} : vector<4x32xf32>, vector<32x32xf32>, vector<4x32xf32> -> vector<4x32xf32>
    %104 = vector.broadcast %75 : vector<1x32xf32> to vector<4x32xf32>
    %105 = arith.addf %103, %104 : vector<4x32xf32>
    %cst_63 = arith.constant 0.000000e+00 : f32
    %106 = vector.broadcast %cst_63 : f32 to vector<4x32xf32>
    %107 = arith.maximumf %105, %106 : vector<4x32xf32>
    %cst_64 = arith.constant dense<0.000000e+00> : vector<4xf32>
    %108 = vector.multi_reduction <add>, %107, %cst_64 [1] : vector<4x32xf32> to vector<4xf32>
    %109 = vector.shape_cast %108 : vector<4xf32> to vector<4x1xf32>
    %cst_65 = arith.constant 3.200000e+01 : f32
    %110 = vector.broadcast %cst_65 : f32 to vector<4x1xf32>
    %111 = arith.divf %109, %110 : vector<4x1xf32>
    %112 = vector.broadcast %111 : vector<4x1xf32> to vector<4x32xf32>
    %113 = arith.subf %107, %112 : vector<4x32xf32>
    %114 = arith.mulf %113, %113 : vector<4x32xf32>
    %cst_66 = arith.constant dense<0.000000e+00> : vector<4xf32>
    %115 = vector.multi_reduction <add>, %114, %cst_66 [1] : vector<4x32xf32> to vector<4xf32>
    %116 = vector.shape_cast %115 : vector<4xf32> to vector<4x1xf32>
    %cst_67 = arith.constant 3.200000e+01 : f32
    %117 = vector.broadcast %cst_67 : f32 to vector<4x1xf32>
    %118 = arith.divf %116, %117 : vector<4x1xf32>
    %cst_68 = arith.constant 9.99999974E-6 : f32
    %119 = vector.broadcast %cst_68 : f32 to vector<4x1xf32>
    %120 = arith.addf %118, %119 : vector<4x1xf32>
    %121 = math.rsqrt %120 : vector<4x1xf32>
    %122 = vector.broadcast %121 : vector<4x1xf32> to vector<4x32xf32>
    %123 = arith.mulf %113, %122 : vector<4x32xf32>
    %124 = vector.broadcast %76 : vector<1x32xf32> to vector<4x32xf32>
    %125 = arith.mulf %123, %124 : vector<4x32xf32>
    %126 = vector.broadcast %77 : vector<1x32xf32> to vector<4x32xf32>
    %127 = arith.addf %125, %126 : vector<4x32xf32>
    %128 = arith.addf %102, %127 : vector<4x32xf32>
    %c0_69 = arith.constant 0 : index
    %c0_70 = arith.constant 0 : index
    %129 = vector.load %arg2[%c0_69, %c0_70] : memref<1x1xf32, #tpu.memory_space<vmem>>, vector<1x1xf32>
    %c0_71 = arith.constant 0 : index
    %c0_72 = arith.constant 0 : index
    %130 = vector.load %arg3[%c0_71, %c0_72] : memref<1x1xf32, #tpu.memory_space<vmem>>, vector<1x1xf32>
    %c0_73 = arith.constant 0 : index
    %c0_74 = arith.constant 0 : index
    %131 = vector.load %arg4[%c0_73, %c0_74] : memref<1x1xf32, #tpu.memory_space<vmem>>, vector<1x1xf32>
    %132 = tpu.iota {dimensions = array<i32: 0>} : vector<6x14xi32>
    %133 = tpu.iota {dimensions = array<i32: 1>} : vector<6x14xi32>
    %c4_i32 = arith.constant 4 : i32
    %134 = vector.broadcast %c4_i32 : i32 to vector<6x14xi32>
    %135 = arith.addi %132, %134 : vector<6x14xi32>
    %c0_i32 = arith.constant 0 : i32
    %136 = vector.broadcast %c0_i32 : i32 to vector<6x14xi32>
    %137 = arith.addi %133, %136 : vector<6x14xi32>
    %138 = arith.cmpi eq, %135, %137 : vector<6x14xi32>
    %139 = arith.extui %138 : vector<6x14xi1> to vector<6x14xi32>
    %140 = arith.sitofp %139 : vector<6x14xi32> to vector<6x14xf32>
    %141 = tpu.iota {dimensions = array<i32: 0>} : vector<4x14xi32>
    %142 = tpu.iota {dimensions = array<i32: 1>} : vector<4x14xi32>
    %c10_i32 = arith.constant 10 : i32
    %143 = vector.broadcast %c10_i32 : i32 to vector<4x14xi32>
    %144 = arith.addi %141, %143 : vector<4x14xi32>
    %c0_i32_75 = arith.constant 0 : i32
    %145 = vector.broadcast %c0_i32_75 : i32 to vector<4x14xi32>
    %146 = arith.addi %142, %145 : vector<4x14xi32>
    %147 = arith.cmpi eq, %144, %146 : vector<4x14xi32>
    %148 = arith.extui %147 : vector<4x14xi1> to vector<4x14xi32>
    %149 = arith.sitofp %148 : vector<4x14xi32> to vector<4x14xf32>
    %cst_76 = arith.constant dense<0.000000e+00> : vector<6x32xf32>
    %150 = tpu.matmul %140, %8, %cst_76 {dimension_numbers = #tpu.dot_dimension_numbers<[1], [0], [0], [1], [0, 0, 1, 1], [], []>} : vector<6x14xf32>, vector<14x32xf32>, vector<6x32xf32> -> vector<6x32xf32>
    %cst_77 = arith.constant dense<0.000000e+00> : vector<4x32xf32>
    %151 = tpu.matmul %149, %8, %cst_77 {dimension_numbers = #tpu.dot_dimension_numbers<[1], [0], [0], [1], [0, 0, 1, 1], [], []>} : vector<4x14xf32>, vector<14x32xf32>, vector<4x32xf32> -> vector<4x32xf32>
    %152 = vector.broadcast %130 : vector<1x1xf32> to vector<6x32xf32>
    %153 = arith.mulf %152, %150 : vector<6x32xf32>
    %cst_78 = arith.constant 1.000000e+00 : f32
    %154 = vector.broadcast %cst_78 : f32 to vector<1x1xf32>
    %155 = arith.subf %154, %130 : vector<1x1xf32>
    %156 = vector.broadcast %155 : vector<1x1xf32> to vector<6x32xf32>
    %157 = arith.mulf %156, %68 : vector<6x32xf32>
    %158 = arith.addf %153, %157 : vector<6x32xf32>
    %159 = vector.broadcast %131 : vector<1x1xf32> to vector<4x32xf32>
    %160 = arith.mulf %159, %151 : vector<4x32xf32>
    %cst_79 = arith.constant 1.000000e+00 : f32
    %161 = vector.broadcast %cst_79 : f32 to vector<1x1xf32>
    %162 = arith.subf %161, %131 : vector<1x1xf32>
    %163 = vector.broadcast %162 : vector<1x1xf32> to vector<4x32xf32>
    %164 = arith.mulf %163, %128 : vector<4x32xf32>
    %165 = arith.addf %160, %164 : vector<4x32xf32>
    %c0_80 = arith.constant 0 : index
    %c0_81 = arith.constant 0 : index
    %166 = vector.load %arg0[%c0_80, %c0_81] : memref<8x1xi32, #tpu.memory_space<vmem>>, vector<8x1xi32>
    %c0_82 = arith.constant 0 : index
    %c0_83 = arith.constant 0 : index
    %167 = vector.load %arg1[%c0_82, %c0_83] : memref<8x1xi32, #tpu.memory_space<vmem>>, vector<8x1xi32>
    %168 = tpu.iota {dimensions = array<i32: 1>} : vector<8x14xi32>
    %169 = vector.broadcast %166 : vector<8x1xi32> to vector<8x14xi32>
    %170 = arith.cmpi eq, %168, %169 : vector<8x14xi32>
    %171 = arith.extui %170 : vector<8x14xi1> to vector<8x14xi32>
    %172 = arith.sitofp %171 : vector<8x14xi32> to vector<8x14xf32>
    %cst_84 = arith.constant dense<0.000000e+00> : vector<8x32xf32>
    %173 = tpu.matmul %172, %8, %cst_84 {dimension_numbers = #tpu.dot_dimension_numbers<[1], [0], [0], [1], [0, 0, 1, 1], [], []>} : vector<8x14xf32>, vector<14x32xf32>, vector<8x32xf32> -> vector<8x32xf32>
    %c0_85 = arith.constant 0 : index
    %c0_86 = arith.constant 0 : index
    %174 = vector.load %arg9[%c0_85, %c0_86] : memref<14x32xf32, #tpu.memory_space<vmem>>, vector<14x32xf32>
    %cst_87 = arith.constant dense<0.000000e+00> : vector<8x32xf32>
    %175 = tpu.matmul %172, %174, %cst_87 {dimension_numbers = #tpu.dot_dimension_numbers<[1], [0], [0], [1], [0, 0, 1, 1], [], []>} : vector<8x14xf32>, vector<14x32xf32>, vector<8x32xf32> -> vector<8x32xf32>
    %176 = vector.broadcast %129 : vector<1x1xf32> to vector<8x32xf32>
    %177 = arith.mulf %176, %173 : vector<8x32xf32>
    %cst_88 = arith.constant 1.000000e+00 : f32
    %178 = vector.broadcast %cst_88 : f32 to vector<1x1xf32>
    %179 = arith.subf %178, %129 : vector<1x1xf32>
    %180 = vector.broadcast %179 : vector<1x1xf32> to vector<8x32xf32>
    %181 = arith.mulf %180, %175 : vector<8x32xf32>
    %182 = arith.addf %177, %181 : vector<8x32xf32>
    %183 = tpu.iota {dimensions = array<i32: 1>} : vector<8x6xi32>
    %c4_i32_89 = arith.constant 4 : i32
    %184 = vector.broadcast %c4_i32_89 : i32 to vector<8x1xi32>
    %185 = arith.subi %166, %184 : vector<8x1xi32>
    %186 = vector.broadcast %185 : vector<8x1xi32> to vector<8x6xi32>
    %187 = arith.cmpi eq, %183, %186 : vector<8x6xi32>
    %188 = arith.extui %187 : vector<8x6xi1> to vector<8x6xi32>
    %189 = arith.sitofp %188 : vector<8x6xi32> to vector<8x6xf32>
    %cst_90 = arith.constant dense<0.000000e+00> : vector<8x32xf32>
    %190 = tpu.matmul %189, %158, %cst_90 {dimension_numbers = #tpu.dot_dimension_numbers<[1], [0], [0], [1], [0, 0, 1, 1], [], []>} : vector<8x6xf32>, vector<6x32xf32>, vector<8x32xf32> -> vector<8x32xf32>
    %c4_i32_91 = arith.constant 4 : i32
    %191 = vector.broadcast %c4_i32_91 : i32 to vector<8x1xi32>
    %192 = arith.cmpi slt, %166, %191 : vector<8x1xi32>
    %193 = arith.extui %192 : vector<8x1xi1> to vector<8x1xi32>
    %194 = arith.sitofp %193 : vector<8x1xi32> to vector<8x1xf32>
    %195 = vector.broadcast %194 : vector<8x1xf32> to vector<8x32xf32>
    %196 = arith.mulf %195, %182 : vector<8x32xf32>
    %cst_92 = arith.constant 1.000000e+00 : f32
    %197 = vector.broadcast %cst_92 : f32 to vector<8x1xf32>
    %198 = arith.subf %197, %194 : vector<8x1xf32>
    %199 = vector.broadcast %198 : vector<8x1xf32> to vector<8x32xf32>
    %200 = arith.mulf %199, %190 : vector<8x32xf32>
    %201 = arith.addf %196, %200 : vector<8x32xf32>
    %202 = tpu.iota {dimensions = array<i32: 1>} : vector<8x6xi32>
    %203 = vector.broadcast %167 : vector<8x1xi32> to vector<8x6xi32>
    %204 = arith.cmpi eq, %202, %203 : vector<8x6xi32>
    %205 = arith.extui %204 : vector<8x6xi1> to vector<8x6xi32>
    %206 = arith.sitofp %205 : vector<8x6xi32> to vector<8x6xf32>
    %c0_93 = arith.constant 0 : index
    %c0_94 = arith.constant 0 : index
    %207 = vector.load %arg8[%c0_93, %c0_94] : memref<6x32xf32, #tpu.memory_space<vmem>>, vector<6x32xf32>
    %cst_95 = arith.constant dense<0.000000e+00> : vector<8x32xf32>
    %208 = tpu.matmul %206, %207, %cst_95 {dimension_numbers = #tpu.dot_dimension_numbers<[1], [0], [0], [1], [0, 0, 1, 1], [], []>} : vector<8x6xf32>, vector<6x32xf32>, vector<8x32xf32> -> vector<8x32xf32>
    %209 = arith.mulf %201, %208 : vector<8x32xf32>
    %210 = tpu.iota {dimensions = array<i32: 0>} : vector<128x6xi32>
    %211 = tpu.iota {dimensions = array<i32: 1>} : vector<128x6xi32>
    %c0_i32_96 = arith.constant 0 : i32
    %212 = vector.broadcast %c0_i32_96 : i32 to vector<128x6xi32>
    %213 = arith.addi %210, %212 : vector<128x6xi32>
    %c0_i32_97 = arith.constant 0 : i32
    %214 = vector.broadcast %c0_i32_97 : i32 to vector<128x6xi32>
    %215 = arith.addi %211, %214 : vector<128x6xi32>
    %216 = arith.cmpi eq, %213, %215 : vector<128x6xi32>
    %217 = arith.extui %216 : vector<128x6xi1> to vector<128x6xi32>
    %218 = arith.sitofp %217 : vector<128x6xi32> to vector<128x6xf32>
    %219 = tpu.iota {dimensions = array<i32: 0>} : vector<128x4xi32>
    %220 = tpu.iota {dimensions = array<i32: 1>} : vector<128x4xi32>
    %c0_i32_98 = arith.constant 0 : i32
    %221 = vector.broadcast %c0_i32_98 : i32 to vector<128x4xi32>
    %222 = arith.addi %219, %221 : vector<128x4xi32>
    %c6_i32 = arith.constant 6 : i32
    %223 = vector.broadcast %c6_i32 : i32 to vector<128x4xi32>
    %224 = arith.addi %220, %223 : vector<128x4xi32>
    %225 = arith.cmpi eq, %222, %224 : vector<128x4xi32>
    %226 = arith.extui %225 : vector<128x4xi1> to vector<128x4xi32>
    %227 = arith.sitofp %226 : vector<128x4xi32> to vector<128x4xf32>
    %cst_99 = arith.constant dense<0.000000e+00> : vector<128x32xf32>
    %228 = tpu.matmul %218, %158, %cst_99 {dimension_numbers = #tpu.dot_dimension_numbers<[1], [0], [0], [1], [0, 0, 1, 1], [], []>} : vector<128x6xf32>, vector<6x32xf32>, vector<128x32xf32> -> vector<128x32xf32>
    %cst_100 = arith.constant dense<0.000000e+00> : vector<128x32xf32>
    %229 = tpu.matmul %227, %165, %cst_100 {dimension_numbers = #tpu.dot_dimension_numbers<[1], [0], [0], [1], [0, 0, 1, 1], [], []>} : vector<128x4xf32>, vector<4x32xf32>, vector<128x32xf32> -> vector<128x32xf32>
    %230 = arith.addf %228, %229 : vector<128x32xf32>
    %231 = tpu.transpose %230, [1, 0] : vector<128x32xf32> -> vector<32x128xf32>
    %cst_101 = arith.constant dense<0.000000e+00> : vector<8x128xf32>
    %232 = tpu.matmul %209, %231, %cst_101 {dimension_numbers = #tpu.dot_dimension_numbers<[1], [0], [0], [1], [0, 0, 1, 1], [], []>} : vector<8x32xf32>, vector<32x128xf32>, vector<8x128xf32> -> vector<8x128xf32>
    %c0_102 = arith.constant 0 : index
    %c0_103 = arith.constant 0 : index
    %233 = vector.load %arg28[%c0_102, %c0_103] : memref<1x128xf32, #tpu.memory_space<vmem>>, vector<1x128xf32>
    %234 = vector.broadcast %233 : vector<1x128xf32> to vector<8x128xf32>
    %235 = arith.addf %232, %234 : vector<8x128xf32>
    %c0_104 = arith.constant 0 : index
    %c0_105 = arith.constant 0 : index
    %236 = vector.load %arg29[%c0_104, %c0_105] : memref<8x128xf32, #tpu.memory_space<vmem>>, vector<8x128xf32>
    tpu.vector_store %arg29[%c0_104, %c0_105], %235 {strides = array<i32>} : memref<8x128xf32, #tpu.memory_space<vmem>>, vector<8x128xf32>,
    %237 = arith.negf %235 : vector<8x128xf32>
    %238 = math.exp %237 : vector<8x128xf32>
    %cst_106 = arith.constant 1.000000e+00 : f32
    %239 = vector.broadcast %cst_106 : f32 to vector<8x128xf32>
    %240 = arith.addf %239, %238 : vector<8x128xf32>
    %241 = arith.divf %239, %240 : vector<8x128xf32>
    %c0_107 = arith.constant 0 : index
    %c0_108 = arith.constant 0 : index
    %242 = vector.load %arg30[%c0_107, %c0_108] : memref<8x128xf32, #tpu.memory_space<vmem>>, vector<8x128xf32>
    tpu.vector_store %arg30[%c0_107, %c0_108], %241 {strides = array<i32>} : memref<8x128xf32, #tpu.memory_space<vmem>>, vector<8x128xf32>,
    return
  }
}

</mosaic_0001>

<llo_original>
// kernel: tarikgc_forward.1
$region0: #{tarikgc_forward.1}
  #allocation0 [shape = 'u32[]', space=smem, size = 0x4, offset = 0x4, fixed_abs, tag = 'smem constant byte address 0x4 - core index']
  #allocation1 [shape = 'u32[144,128]{1,0:T(1,128)}', space=vmem, size = 0x12000, scoped, tag = 'internal scratch']
  #allocation2 [shape = 'f32[1,1]{1,0:T(1,128)S(1)}', space=vmem, size = 0x200, scoped, tag = 'scoped memory for tarikgc_forward.1']
  #allocation3 [shape = 'f32[1,1]{1,0:T(1,128)S(1)}', space=vmem, size = 0x200, scoped, tag = 'scoped memory for tarikgc_forward.1']
  #allocation4 [shape = 'f32[1,1]{1,0:T(1,128)S(1)}', space=vmem, size = 0x200, scoped, tag = 'scoped memory for tarikgc_forward.1']
  %s0 = inlined_call_operand.smem [shape: u32[31], index: -1, kind: input, shape index: {}]
  %s1 = sld [smem:[%s0]]
  %s2 = scalar_lea.smem %s0, 1
  %s3 = sld [smem:[%s2]]
  %s4 = scalar_lea.smem %s0, 2
  %s5 = sld [smem:[%s4]]
  %s6 = scalar_lea.smem %s0, 3
  %s7 = sld [smem:[%s6]]
  %s8 = scalar_lea.smem %s0, 4
  %s9 = sld [smem:[%s8]]
  %s10 = scalar_lea.smem %s0, 5
  %s11 = sld [smem:[%s10]]
  %s12 = scalar_lea.smem %s0, 6
  %s13 = sld [smem:[%s12]]
  %s14 = scalar_lea.smem %s0, 7
  %s15 = sld [smem:[%s14]]
  %s16 = scalar_lea.smem %s0, 8
  %s17 = sld [smem:[%s16]]
  %s18 = scalar_lea.smem %s0, 9
  %s19 = sld [smem:[%s18]]
  %s20 = scalar_lea.smem %s0, 10
  %s21 = sld [smem:[%s20]]
  %s22 = scalar_lea.smem %s0, 11
  %s23 = sld [smem:[%s22]]
  %s24 = scalar_lea.smem %s0, 12
  %s25 = sld [smem:[%s24]]
  %s26 = scalar_lea.smem %s0, 13
  %s27 = sld [smem:[%s26]]
  %s28 = scalar_lea.smem %s0, 14
  %s29 = sld [smem:[%s28]]
  %s30 = scalar_lea.smem %s0, 15
  %s31 = sld [smem:[%s30]]
  %s32 = scalar_lea.smem %s0, 16
  %s33 = sld [smem:[%s32]]
  %s34 = scalar_lea.smem %s0, 17
  %s35 = sld [smem:[%s34]]
  %s36 = scalar_lea.smem %s0, 18
  %s37 = sld [smem:[%s36]]
  %s38 = scalar_lea.smem %s0, 19
  %s39 = sld [smem:[%s38]]
  %s40 = scalar_lea.smem %s0, 20
  %s41 = sld [smem:[%s40]]
  %s42 = scalar_lea.smem %s0, 21
  %s43 = sld [smem:[%s42]]
  %s44 = scalar_lea.smem %s0, 22
  %s45 = sld [smem:[%s44]]
  %s46 = scalar_lea.smem %s0, 23
  %s47 = sld [smem:[%s46]]
  %s48 = scalar_lea.smem %s0, 24
  %s49 = sld [smem:[%s48]]
  %s50 = scalar_lea.smem %s0, 25
  %s51 = sld [smem:[%s50]]
  %s52 = scalar_lea.smem %s0, 26
  %s53 = sld [smem:[%s52]]
  %s54 = scalar_lea.smem %s0, 27
  %s55 = sld [smem:[%s54]]
  %s56 = scalar_lea.smem %s0, 28
  %s57 = sld [smem:[%s56]]
  %s58 = scalar_lea.smem %s0, 29
  %s59 = sld [smem:[%s58]]
  %s60 = scalar_lea.smem %s0, 30
  %s61 = sld [smem:[%s60]]
  %62 = xla_tuple %s59, %s61
  %s63 = sld [smem:[#allocation0]]
  $region134: #{tarikgc_forward.1} parent=0
    _
  %s65 = ssub.s32 1, %s63
  %s66 = scalar_select 0, %s65, %s63
  %v67 = vstv %s5
  %68 = vst [vmem:[#allocation2] sm:$0x1] %v67
  %v69 = vstv %s7
  %70 = vst [vmem:[#allocation3] sm:$0x1] %v69
  %v71 = vstv %s9
  %72 = vst [vmem:[#allocation4] sm:$0x1] %v71
  $region1: #{tarikgc_forward.1} parent=0
    #allocation5 [shape = 'u8[4096]{0}', space=vmem, size = 0x1000, scoped, tag = 'output window, operand 0, single buffered']
    #allocation6 [shape = 's32[1]{0}', space=sflag, size = 0x4, scoped, tag = 'scoped memory for tarikgc_forward.1']
    #allocation7 [shape = 'u8[4096]{0}', space=vmem, size = 0x1000, scoped, tag = 'output window, operand 1, single buffered']
    #allocation8 [shape = 's32[1]{0}', space=sflag, size = 0x4, scoped, tag = 'scoped memory for tarikgc_forward.1']
    %73 = vsyncpa [#allocation6], 0
    %74 = vsyncpa [#allocation8], 0
    // Predicated region
    $region2: #{tarikgc_forward.1} parent=1 // pred_check
      _
    $region3: #{tarikgc_forward.1} parent=1 // pred_check_branch
      %76 = sbr.rel (0) target = $region5
    $region4: #{tarikgc_forward.1} parent=1 // pred_region
      _
    $region5: #{tarikgc_forward.1} parent=1 // pred_fallthru
      _
    // Predicated region
    $region6: #{tarikgc_forward.1} parent=1 // pred_check
      _
    $region7: #{tarikgc_forward.1} parent=1 // pred_check_branch
      %78 = sbr.rel (0) target = $region9
    $region8: #{tarikgc_forward.1} parent=1 // pred_region
      _
    $region9: #{tarikgc_forward.1} parent=1 // pred_fallthru
      _
    // Predicated region
    $region10: #{tarikgc_forward.1} parent=1 // pred_check
      _
    $region11: #{tarikgc_forward.1} parent=1 // pred_check_branch
      %80 = sbr.rel (0) target = $region13
    $region12: #{tarikgc_forward.1} parent=1 // pred_region
      _
    $region13: #{tarikgc_forward.1} parent=1 // pred_fallthru
      _
    // Predicated region
    $region14: #{tarikgc_forward.1} parent=1 // pred_check
      _
    $region15: #{tarikgc_forward.1} parent=1 // pred_check_branch
      %82 = sbr.rel (0) target = $region17
    $region16: #{tarikgc_forward.1} parent=1 // pred_region
      _
    $region17: #{tarikgc_forward.1} parent=1 // pred_fallthru
      _
    // Predicated region
    $region18: #{tarikgc_forward.1} parent=1 // pred_check
      _
    $region19: #{tarikgc_forward.1} parent=1 // pred_check_branch
      %84 = sbr.rel (0) target = $region21
    $region20: #{tarikgc_forward.1} parent=1 // pred_region
      _
    $region21: #{tarikgc_forward.1} parent=1 // pred_fallthru
      _
    // Predicated region
    $region22: #{tarikgc_forward.1} parent=1 // pred_check
      _
    $region23: #{tarikgc_forward.1} parent=1 // pred_check_branch
      %86 = sbr.rel (0) target = $region25
    $region24: #{tarikgc_forward.1} parent=1 // pred_region
      _
    $region25: #{tarikgc_forward.1} parent=1 // pred_fallthru
      _
    // Predicated region
    $region26: #{tarikgc_forward.1} parent=1 // pred_check
      _
    $region27: #{tarikgc_forward.1} parent=1 // pred_check_branch
      %88 = sbr.rel (0) target = $region29
    $region28: #{tarikgc_forward.1} parent=1 // pred_region
      _
    $region29: #{tarikgc_forward.1} parent=1 // pred_fallthru
      _
    // Predicated region
    $region30: #{tarikgc_forward.1} parent=1 // pred_check
      _
    $region31: #{tarikgc_forward.1} parent=1 // pred_check_branch
      %90 = sbr.rel (0) target = $region33
    $region32: #{tarikgc_forward.1} parent=1 // pred_region
      _
    $region33: #{tarikgc_forward.1} parent=1 // pred_fallthru
      _
    // Predicated region
    $region34: #{tarikgc_forward.1} parent=1 // pred_check
      _
    $region35: #{tarikgc_forward.1} parent=1 // pred_check_branch
      %92 = sbr.rel (0) target = $region37
    $region36: #{tarikgc_forward.1} parent=1 // pred_region
      _
    $region37: #{tarikgc_forward.1} parent=1 // pred_fallthru
      _
    // Predicated region
    $region38: #{tarikgc_forward.1} parent=1 // pred_check
      _
    $region39: #{tarikgc_forward.1} parent=1 // pred_check_branch
      %94 = sbr.rel (0) target = $region41
    $region40: #{tarikgc_forward.1} parent=1 // pred_region
      _
    $region41: #{tarikgc_forward.1} parent=1 // pred_fallthru
      _
    // Predicated region
    $region42: #{tarikgc_forward.1} parent=1 // pred_check
      _
    $region43: #{tarikgc_forward.1} parent=1 // pred_check_branch
      %96 = sbr.rel (0) target = $region45
    $region44: #{tarikgc_forward.1} parent=1 // pred_region
      _
    $region45: #{tarikgc_forward.1} parent=1 // pred_fallthru
      _
    // Predicated region
    $region46: #{tarikgc_forward.1} parent=1 // pred_check
      _
    $region47: #{tarikgc_forward.1} parent=1 // pred_check_branch
      %98 = sbr.rel (0) target = $region49
    $region48: #{tarikgc_forward.1} parent=1 // pred_region
      _
    $region49: #{tarikgc_forward.1} parent=1 // pred_fallthru
      _
    // Predicated region
    $region50: #{tarikgc_forward.1} parent=1 // pred_check
      _
    $region51: #{tarikgc_forward.1} parent=1 // pred_check_branch
      %100 = sbr.rel (0) target = $region53
    $region52: #{tarikgc_forward.1} parent=1 // pred_region
      _
    $region53: #{tarikgc_forward.1} parent=1 // pred_fallthru
      _
    // Predicated region
    $region54: #{tarikgc_forward.1} parent=1 // pred_check
      _
    $region55: #{tarikgc_forward.1} parent=1 // pred_check_branch
      %102 = sbr.rel (0) target = $region57
    $region56: #{tarikgc_forward.1} parent=1 // pred_region
      _
    $region57: #{tarikgc_forward.1} parent=1 // pred_fallthru
      _
    // Predicated region
    $region58: #{tarikgc_forward.1} parent=1 // pred_check
      _
    $region59: #{tarikgc_forward.1} parent=1 // pred_check_branch
      %104 = sbr.rel (0) target = $region61
    $region60: #{tarikgc_forward.1} parent=1 // pred_region
      _
    $region61: #{tarikgc_forward.1} parent=1 // pred_fallthru
      _
    // Predicated region
    $region62: #{tarikgc_forward.1} parent=1 // pred_check
      _
    $region63: #{tarikgc_forward.1} parent=1 // pred_check_branch
      %106 = sbr.rel (0) target = $region65
    $region64: #{tarikgc_forward.1} parent=1 // pred_region
      _
    $region65: #{tarikgc_forward.1} parent=1 // pred_fallthru
      _
    // Predicated region
    $region66: #{tarikgc_forward.1} parent=1 // pred_check
      _
    $region67: #{tarikgc_forward.1} parent=1 // pred_check_branch
      %108 = sbr.rel (0) target = $region69
    $region68: #{tarikgc_forward.1} parent=1 // pred_region
      _
    $region69: #{tarikgc_forward.1} parent=1 // pred_fallthru
      _
    // Predicated region
    $region70: #{tarikgc_forward.1} parent=1 // pred_check
      _
    $region71: #{tarikgc_forward.1} parent=1 // pred_check_branch
      %110 = sbr.rel (0) target = $region73
    $region72: #{tarikgc_forward.1} parent=1 // pred_region
      _
    $region73: #{tarikgc_forward.1} parent=1 // pred_fallthru
      _
    // Predicated region
    $region74: #{tarikgc_forward.1} parent=1 // pred_check
      _
    $region75: #{tarikgc_forward.1} parent=1 // pred_check_branch
      %112 = sbr.rel (0) target = $region77
    $region76: #{tarikgc_forward.1} parent=1 // pred_region
      _
    $region77: #{tarikgc_forward.1} parent=1 // pred_fallthru
      _
    // Predicated region
    $region78: #{tarikgc_forward.1} parent=1 // pred_check
      _
    $region79: #{tarikgc_forward.1} parent=1 // pred_check_branch
      %114 = sbr.rel (0) target = $region81
    $region80: #{tarikgc_forward.1} parent=1 // pred_region
      _
    $region81: #{tarikgc_forward.1} parent=1 // pred_fallthru
      _
    // Predicated region
    $region82: #{tarikgc_forward.1} parent=1 // pred_check
      _
    $region83: #{tarikgc_forward.1} parent=1 // pred_check_branch
      %116 = sbr.rel (0) target = $region85
    $region84: #{tarikgc_forward.1} parent=1 // pred_region
      _
    $region85: #{tarikgc_forward.1} parent=1 // pred_fallthru
      _
    // Predicated region
    $region86: #{tarikgc_forward.1} parent=1 // pred_check
      _
    $region87: #{tarikgc_forward.1} parent=1 // pred_check_branch
      %118 = sbr.rel (0) target = $region89
    $region88: #{tarikgc_forward.1} parent=1 // pred_region
      _
    $region89: #{tarikgc_forward.1} parent=1 // pred_fallthru
      _
    // Predicated region
    $region90: #{tarikgc_forward.1} parent=1 // pred_check
      _
    $region91: #{tarikgc_forward.1} parent=1 // pred_check_branch
      %120 = sbr.rel (0) target = $region93
    $region92: #{tarikgc_forward.1} parent=1 // pred_region
      _
    $region93: #{tarikgc_forward.1} parent=1 // pred_fallthru
      _
    // Predicated region
    $region94: #{tarikgc_forward.1} parent=1 // pred_check
      _
    $region95: #{tarikgc_forward.1} parent=1 // pred_check_branch
      %122 = sbr.rel (0) target = $region97
    $region96: #{tarikgc_forward.1} parent=1 // pred_region
      _
    $region97: #{tarikgc_forward.1} parent=1 // pred_fallthru
      _
    // Predicated region
    $region98: #{tarikgc_forward.1} parent=1 // pred_check
      _
    $region99: #{tarikgc_forward.1} parent=1 // pred_check_branch
      %124 = sbr.rel (0) target = $region101
    $region100: #{tarikgc_forward.1} parent=1 // pred_region
      _
    $region101: #{tarikgc_forward.1} parent=1 // pred_fallthru
      _
    // Predicated region
    $region102: #{tarikgc_forward.1} parent=1 // pred_check
      _
    $region103: #{tarikgc_forward.1} parent=1 // pred_check_branch
      %126 = sbr.rel (0) target = $region105
    $region104: #{tarikgc_forward.1} parent=1 // pred_region
      _
    $region105: #{tarikgc_forward.1} parent=1 // pred_fallthru
      _
    // Predicated region
    $region106: #{tarikgc_forward.1} parent=1 // pred_check
      _
    $region107: #{tarikgc_forward.1} parent=1 // pred_check_branch
      %128 = sbr.rel (0) target = $region109
    $region108: #{tarikgc_forward.1} parent=1 // pred_region
      _
    $region109: #{tarikgc_forward.1} parent=1 // pred_fallthru
      _
    // Predicated region
    $region110: #{tarikgc_forward.1} parent=1 // pred_check
      _
    $region111: #{tarikgc_forward.1} parent=1 // pred_check_branch
      %130 = sbr.rel (0) target = $region113
    $region112: #{tarikgc_forward.1} parent=1 // pred_region
      _
    $region113: #{tarikgc_forward.1} parent=1 // pred_fallthru
      _
    // Predicated region
    $region114: #{tarikgc_forward.1} parent=1 // pred_check
      _
    $region115: #{tarikgc_forward.1} parent=1 // pred_check_branch
      %132 = sbr.rel (0) target = $region117
    $region116: #{tarikgc_forward.1} parent=1 // pred_region
      _
    $region117: #{tarikgc_forward.1} parent=1 // pred_fallthru
      _
    %v134 = vld [vmem:[%s13] sm:$0x1]
    %v135 = vmul.f32 %v134, 0.999995
    %v136 = vld [vmem:[%s11] sm:$0xff]
    %v137 = vld [vmem:[%s11 + $0x8] sm:$0x3f]
    %v139 = vlaneseq
    %v140 = vshrl.u32 %v139, 7
    %v141 = vsub.s32 0, %v140
    %v142 = vrot.slane %v135, %v141
    %v144 = vmul.f32 %v136, %v142
    %v145 = vmul.f32 %v137, %v142
    %v146 = vld [vmem:[%s15] sm:$0x1]
    %v148 = vlaneseq
    %v149 = vshrl.u32 %v148, 7
    %v150 = vsub.s32 0, %v149
    %v151 = vrot.slane %v146, %v150
    %v153 = vadd.f32 %v144, %v151
    %v154 = vadd.f32 %v145, %v151
    %v155 = vld [vmem:[%s21] sm:$0x3f]
    %v156 = vld [vmem:[%s23] sm:$0xff]
    %v157 = vld [vmem:[%s23 + $0x8] sm:$0xff]
    %v158 = vld [vmem:[%s23 + $0x10] sm:$0xff]
    %v159 = vld [vmem:[%s23 + $0x18] sm:$0xff]
    %v160 = vld [vmem:[%s23 + $0x20] sm:$0xff]
    %v161 = vld [vmem:[%s23 + $0x28] sm:$0xff]
    %v162 = vld [vmem:[%s25] sm:$0x1]
    %v163 = vld [vmem:[%s27] sm:$0x1]
    %v164 = vld [vmem:[%s29] sm:$0x1]
    %v165 = vld [vmem:[%s31] sm:$0xff]
    %v166 = vld [vmem:[%s31 + $0x8] sm:$0xff]
    %v167 = vld [vmem:[%s31 + $0x10] sm:$0xff]
    %v168 = vld [vmem:[%s31 + $0x18] sm:$0xff]
    %v169 = vld [vmem:[%s33] sm:$0x1]
    %v170 = vld [vmem:[%s35] sm:$0x1]
    %v171 = vld [vmem:[%s37] sm:$0x1]
    %v173 = vlaneseq
    %v174 = vshrl.u32 %v173, 7
    %v175 = vsub.s32 0, %v174
    %v176 = vrot.slane %v162, %v175
    %vm178 = vcmask 392192
    %v180 = vsel %vm178, %v155, 0
    %182 = vmatprep.subr.mxu0 0.0
    %183 = vmatpush1.msra.mxu0 %v156
    %184 = vmatprep.subr.mxu0 0.0
    %185 = vmatpush1.msra.mxu0 %v157
    %186 = vmatprep.subr.mxu0 0.0
    %187 = vmatpush1.msra.mxu0 %v158
    %188 = vmatprep.subr.mxu0 0.0
    %189 = vmatpush1.msra.mxu0 %v159
    %190 = vmatprep.subr.mxu0 0.0
    %191 = vmatpush1.msra.mxu0 %v160
    %192 = vmatprep.subr.mxu0 0.0
    %193 = vmatpush1.msra.mxu0 %v161
    %194 = vmatprep.subr.mxu0 0.0
    %195 = vmatpush1.msra.mxu0 0.0
    %196 = vmatprep.subr.mxu0 0.0
    %197 = vmatpush1.msra.mxu0 0.0
    %198 = vmatprep.subr.mxu0 0.0
    %199 = vmatpush1.msra.mxu0 0.0
    %200 = vmatprep.subr.mxu0 0.0
    %201 = vmatpush1.msra.mxu0 0.0
    %202 = vmatprep.subr.mxu0 0.0
    %203 = vmatpush1.msra.mxu0 0.0
    %204 = vmatprep.subr.mxu0 0.0
    %205 = vmatpush1.msra.mxu0 0.0
    %206 = vmatprep.subr.mxu0 0.0
    %207 = vmatpush1.msra.mxu0 0.0
    %208 = vmatprep.subr.mxu0 0.0
    %209 = vmatpush1.msra.mxu0 0.0
    %210 = vmatprep.subr.mxu0 0.0
    %211 = vmatpush1.msra.mxu0 0.0
    %212 = vmatprep.subr.mxu0 0.0
    %213 = vmatpush1.msra.mxu0 0.0
    %214 = vmatprep.subr.mxu0 0.0
    %215 = vmatpush1.msra.mxu0 0.0
    %216 = vmatprep.subr.mxu0 0.0
    %217 = vmatpush1.msra.mxu0 0.0
    %218 = vmatprep.subr.mxu0 0.0
    %219 = vmatpush1.msra.mxu0 0.0
    %220 = vmatprep.subr.mxu0 0.0
    %221 = vmatpush1.msra.mxu0 0.0
    %222 = vmatprep.subr.mxu0 0.0
    %223 = vmatpush1.msra.mxu0 0.0
    %224 = vmatprep.subr.mxu0 0.0
    %225 = vmatpush1.msra.mxu0 0.0
    %226 = vmatprep.subr.mxu0 0.0
    %227 = vmatpush1.msra.mxu0 0.0
    %228 = vmatprep.subr.mxu0 0.0
    %229 = vmatpush1.msra.mxu0 0.0
    %230 = vmatprep.subr.mxu0 0.0
    %231 = vmatpush1.msra.mxu0 0.0
    %232 = vmatprep.subr.mxu0 0.0
    %233 = vmatpush1.msra.mxu0 0.0
    %234 = vmatprep.subr.mxu0 0.0
    %235 = vmatpush1.msra.mxu0 0.0
    %236 = vmatprep.subr.mxu0 0.0
    %237 = vmatpush1.msra.mxu0 0.0
    %238 = vmatprep.subr.mxu0 0.0
    %239 = vmatpush1.msra.mxu0 0.0
    %240 = vmatprep.subr.mxu0 0.0
    %241 = vmatpush1.msra.mxu0 0.0
    %242 = vmatprep.subr.mxu0 0.0
    %243 = vmatpush1.msra.mxu0 0.0
    %244 = vmatprep.subr.mxu0 0.0
    %245 = vmatpush1.msra.mxu0 0.0
    %246 = vmatprep.mubr.f32.mxu0 0.0
    %247 = vmatmul.mubr.f32.gmra.mrb[0].mxu0 %v180
    %v248 = vpop.f32.mrb[0].mxu0
    %v249 = vadd.f32 %v176, %v248
    %v250 = vpop.f32.mrb[0].mxu0
    %251 = vdwg.mxu0
    %v252 = vmax.f32 %v249, 0.0
    %vm253 = vcmask 259072
    %v254 = vsel %vm253, %v252, 0.0
    %255 = vadd.xlane.f32.xlu0 %v254
    %v256 = vpop.xlane.xlu0 %255
    %v257 = vrcp.pop 32.0
    %v258 = vmul.f32 %v256, %v257
    %v259 = vsub.f32 %v252, %v258
    %v260 = vmul.f32 %v259, %v259
    %v261 = vsel %vm253, %v260, 0.0
    %262 = vadd.xlane.f32.xlu0 %v261
    %v263 = vpop.xlane.xlu0 %262
    %v264 = vmul.f32 %v263, %v257
    %v265 = vadd.f32 %v264, 1e-05
    %v266 = vrsqrt.pop %v265
    %v267 = vmul.f32 %v259, %v266
    %v269 = vlaneseq
    %v270 = vshrl.u32 %v269, 7
    %v271 = vsub.s32 0, %v270
    %v272 = vrot.slane %v163, %v271
    %v274 = vmul.f32 %v267, %v272
    %v276 = vlaneseq
    %v277 = vshrl.u32 %v276, 7
    %v278 = vsub.s32 0, %v277
    %v279 = vrot.slane %v164, %v278
    %v281 = vadd.f32 %v274, %v279
    %v283 = vlaneseq
    %v284 = vshrl.u32 %v283, 7
    %v285 = vsub.s32 0, %v284
    %v286 = vrot.slane %v169, %v285
    %vm288 = vcmask 261120
    %v290 = vsel %vm288, %v281, 0
    %292 = vmatprep.subr.mxu0 0.0
    %293 = vmatpush1.msra.mxu0 %v165
    %294 = vmatprep.subr.mxu0 0.0
    %295 = vmatpush1.msra.mxu0 %v166
    %296 = vmatprep.subr.mxu0 0.0
    %297 = vmatpush1.msra.mxu0 %v167
    %298 = vmatprep.subr.mxu0 0.0
    %299 = vmatpush1.msra.mxu0 %v168
    %300 = vmatprep.subr.mxu0 0.0
    %301 = vmatpush1.msra.mxu0 0.0
    %302 = vmatprep.subr.mxu0 0.0
    %303 = vmatpush1.msra.mxu0 0.0
    %304 = vmatprep.subr.mxu0 0.0
    %305 = vmatpush1.msra.mxu0 0.0
    %306 = vmatprep.subr.mxu0 0.0
    %307 = vmatpush1.msra.mxu0 0.0
    %308 = vmatprep.subr.mxu0 0.0
    %309 = vmatpush1.msra.mxu0 0.0
    %310 = vmatprep.subr.mxu0 0.0
    %311 = vmatpush1.msra.mxu0 0.0
    %312 = vmatprep.subr.mxu0 0.0
    %313 = vmatpush1.msra.mxu0 0.0
    %314 = vmatprep.subr.mxu0 0.0
    %315 = vmatpush1.msra.mxu0 0.0
    %316 = vmatprep.subr.mxu0 0.0
    %317 = vmatpush1.msra.mxu0 0.0
    %318 = vmatprep.subr.mxu0 0.0
    %319 = vmatpush1.msra.mxu0 0.0
    %320 = vmatprep.subr.mxu0 0.0
    %321 = vmatpush1.msra.mxu0 0.0
    %322 = vmatprep.subr.mxu0 0.0
    %323 = vmatpush1.msra.mxu0 0.0
    %324 = vmatprep.subr.mxu0 0.0
    %325 = vmatpush1.msra.mxu0 0.0
    %326 = vmatprep.subr.mxu0 0.0
    %327 = vmatpush1.msra.mxu0 0.0
    %328 = vmatprep.subr.mxu0 0.0
    %329 = vmatpush1.msra.mxu0 0.0
    %330 = vmatprep.subr.mxu0 0.0
    %331 = vmatpush1.msra.mxu0 0.0
    %332 = vmatprep.subr.mxu0 0.0
    %333 = vmatpush1.msra.mxu0 0.0
    %334 = vmatprep.subr.mxu0 0.0
    %335 = vmatpush1.msra.mxu0 0.0
    %336 = vmatprep.subr.mxu0 0.0
    %337 = vmatpush1.msra.mxu0 0.0
    %338 = vmatprep.subr.mxu0 0.0
    %339 = vmatpush1.msra.mxu0 0.0
    %340 = vmatprep.subr.mxu0 0.0
    %341 = vmatpush1.msra.mxu0 0.0
    %342 = vmatprep.subr.mxu0 0.0
    %343 = vmatpush1.msra.mxu0 0.0
    %344 = vmatprep.subr.mxu0 0.0
    %345 = vmatpush1.msra.mxu0 0.0
    %346 = vmatprep.subr.mxu0 0.0
    %347 = vmatpush1.msra.mxu0 0.0
    %348 = vmatprep.subr.mxu0 0.0
    %349 = vmatpush1.msra.mxu0 0.0
    %350 = vmatprep.subr.mxu0 0.0
    %351 = vmatpush1.msra.mxu0 0.0
    %352 = vmatprep.subr.mxu0 0.0
    %353 = vmatpush1.msra.mxu0 0.0
    %354 = vmatprep.subr.mxu0 0.0
    %355 = vmatpush1.msra.mxu0 0.0
    %356 = vmatprep.mubr.f32.mxu0 0.0
    %357 = vmatmul.mubr.f32.gmra.mrb[0].mxu0 %v290
    %v358 = vpop.f32.mrb[0].mxu0
    %v359 = vadd.f32 %v286, %v358
    %v360 = vpop.f32.mrb[0].mxu0
    %361 = vdwg.mxu0
    %v362 = vmax.f32 %v359, 0.0
    %v363 = vsel %vm253, %v362, 0.0
    %364 = vadd.xlane.f32.xlu0 %v363
    %v365 = vpop.xlane.xlu0 %364
    %v366 = vmul.f32 %v365, %v257
    %v367 = vsub.f32 %v362, %v366
    %v368 = vmul.f32 %v367, %v367
    %v369 = vsel %vm253, %v368, 0.0
    %370 = vadd.xlane.f32.xlu0 %v369
    %v371 = vpop.xlane.xlu0 %370
    %v372 = vmul.f32 %v371, %v257
    %v373 = vadd.f32 %v372, 1e-05
    %v374 = vrsqrt.pop %v373
    %v375 = vmul.f32 %v367, %v374
    %v377 = vlaneseq
    %v378 = vshrl.u32 %v377, 7
    %v379 = vsub.s32 0, %v378
    %v380 = vrot.slane %v170, %v379
    %v382 = vmul.f32 %v375, %v380
    %v384 = vlaneseq
    %v385 = vshrl.u32 %v384, 7
    %v386 = vsub.s32 0, %v385
    %v387 = vrot.slane %v171, %v386
    %v389 = vadd.f32 %v382, %v387
    %v390 = vadd.f32 %v281, %v389
    %v391 = vld [vmem:[%s39] sm:$0xff]
    %v392 = vld [vmem:[%s39 + $0x8] sm:$0xff]
    %v393 = vld [vmem:[%s41] sm:$0xf]
    %v394 = vld [vmem:[%s41 + $0x4] sm:$0xf]
    %v395 = vld [vmem:[%s41 + $0x8] sm:$0xf]
    %v396 = vld [vmem:[%s41 + $0xc] sm:$0xf]
    %v397 = vld [vmem:[%s41 + $0x10] sm:$0xf]
    %v398 = vld [vmem:[%s41 + $0x14] sm:$0xf]
    %v399 = vld [vmem:[%s41 + $0x18] sm:$0xf]
    %v400 = vld [vmem:[%s41 + $0x1c] sm:$0xf]
    %v401 = vld [vmem:[%s41 + $0x20] sm:$0xf]
    %v402 = vld [vmem:[%s41 + $0x24] sm:$0xf]
    %v403 = vld [vmem:[%s41 + $0x28] sm:$0xf]
    %v404 = vld [vmem:[%s41 + $0x2c] sm:$0xf]
    %v405 = vld [vmem:[%s41 + $0x30] sm:$0xf]
    %v406 = vld [vmem:[%s41 + $0x34] sm:$0xf]
    %v407 = vld [vmem:[%s41 + $0x38] sm:$0xf]
    %v408 = vld [vmem:[%s41 + $0x3c] sm:$0xf]
    %v409 = vld [vmem:[%s41 + $0x40] sm:$0xf]
    %v410 = vld [vmem:[%s41 + $0x44] sm:$0xf]
    %v411 = vld [vmem:[%s41 + $0x48] sm:$0xf]
    %v412 = vld [vmem:[%s41 + $0x4c] sm:$0xf]
    %v413 = vld [vmem:[%s41 + $0x50] sm:$0xf]
    %v414 = vld [vmem:[%s41 + $0x54] sm:$0xf]
    %v415 = vld [vmem:[%s41 + $0x58] sm:$0xf]
    %v416 = vld [vmem:[%s41 + $0x5c] sm:$0xf]
    %v417 = vld [vmem:[%s41 + $0x60] sm:$0xf]
    %v418 = vld [vmem:[%s41 + $0x64] sm:$0xf]
    %v419 = vld [vmem:[%s41 + $0x68] sm:$0xf]
    %v420 = vld [vmem:[%s41 + $0x6c] sm:$0xf]
    %v421 = vld [vmem:[%s41 + $0x70] sm:$0xf]
    %v422 = vld [vmem:[%s41 + $0x74] sm:$0xf]
    %v423 = vld [vmem:[%s41 + $0x78] sm:$0xf]
    %v424 = vld [vmem:[%s41 + $0x7c] sm:$0xf]
    %v425 = vld [vmem:[%s41 + $0x80] sm:$0xf]
    %v426 = vld [vmem:[%s41 + $0x84] sm:$0xf]
    %v427 = vld [vmem:[%s41 + $0x88] sm:$0xf]
    %v428 = vld [vmem:[%s41 + $0x8c] sm:$0xf]
    %v429 = vld [vmem:[%s41 + $0x90] sm:$0xf]
    %v430 = vld [vmem:[%s41 + $0x94] sm:$0xf]
    %v431 = vld [vmem:[%s41 + $0x98] sm:$0xf]
    %v432 = vld [vmem:[%s41 + $0x9c] sm:$0xf]
    %v433 = vld [vmem:[%s41 + $0xa0] sm:$0xf]
    %v434 = vld [vmem:[%s41 + $0xa4] sm:$0xf]
    %v435 = vld [vmem:[%s41 + $0xa8] sm:$0xf]
    %v436 = vld [vmem:[%s41 + $0xac] sm:$0xf]
    %v437 = vld [vmem:[%s41 + $0xb0] sm:$0xf]
    %v438 = vld [vmem:[%s41 + $0xb4] sm:$0xf]
    %v439 = vld [vmem:[%s41 + $0xb8] sm:$0xf]
    %v440 = vld [vmem:[%s41 + $0xbc] sm:$0xf]
    %v441 = vld [vmem:[%s41 + $0xc0] sm:$0xf]
    %v442 = vld [vmem:[%s41 + $0xc4] sm:$0xf]
    %v443 = vld [vmem:[%s41 + $0xc8] sm:$0xf]
    %v444 = vld [vmem:[%s41 + $0xcc] sm:$0xf]
    %v445 = vld [vmem:[%s41 + $0xd0] sm:$0xf]
    %v446 = vld [vmem:[%s41 + $0xd4] sm:$0xf]
    %v447 = vld [vmem:[%s41 + $0xd8] sm:$0xf]
    %v448 = vld [vmem:[%s41 + $0xdc] sm:$0xf]
    %v449 = vld [vmem:[%s41 + $0xe0] sm:$0xf]
    %v450 = vld [vmem:[%s41 + $0xe4] sm:$0xf]
    %v451 = vld [vmem:[%s41 + $0xe8] sm:$0xf]
    %v452 = vld [vmem:[%s41 + $0xec] sm:$0xf]
    %v453 = vld [vmem:[%s41 + $0xf0] sm:$0xf]
    %v454 = vld [vmem:[%s41 + $0xf4] sm:$0xf]
    %v455 = vld [vmem:[%s41 + $0xf8] sm:$0xf]
    %v456 = vld [vmem:[%s41 + $0xfc] sm:$0xf]
    %v457 = vld [vmem:[%s41 + $0x100] sm:$0xf]
    %v458 = vld [vmem:[%s41 + $0x104] sm:$0xf]
    %v459 = vld [vmem:[%s41 + $0x108] sm:$0xf]
    %v460 = vld [vmem:[%s41 + $0x10c] sm:$0xf]
    %v461 = vld [vmem:[%s41 + $0x110] sm:$0xf]
    %v462 = vld [vmem:[%s41 + $0x114] sm:$0xf]
    %v463 = vld [vmem:[%s41 + $0x118] sm:$0xf]
    %v464 = vld [vmem:[%s41 + $0x11c] sm:$0xf]
    %v465 = vld [vmem:[%s41 + $0x120] sm:$0xf]
    %v466 = vld [vmem:[%s41 + $0x124] sm:$0xf]
    %v467 = vld [vmem:[%s41 + $0x128] sm:$0xf]
    %v468 = vld [vmem:[%s41 + $0x12c] sm:$0xf]
    %v469 = vld [vmem:[%s41 + $0x130] sm:$0xf]
    %v470 = vld [vmem:[%s41 + $0x134] sm:$0xf]
    %v471 = vld [vmem:[%s41 + $0x138] sm:$0xf]
    %v472 = vld [vmem:[%s41 + $0x13c] sm:$0xf]
    %v473 = vld [vmem:[%s41 + $0x140] sm:$0xf]
    %v474 = vld [vmem:[%s41 + $0x144] sm:$0xf]
    %v475 = vld [vmem:[%s41 + $0x148] sm:$0xf]
    %v476 = vld [vmem:[%s41 + $0x14c] sm:$0xf]
    %v477 = vld [vmem:[%s41 + $0x150] sm:$0xf]
    %v478 = vld [vmem:[%s41 + $0x154] sm:$0xf]
    %v479 = vld [vmem:[%s41 + $0x158] sm:$0xf]
    %v480 = vld [vmem:[%s41 + $0x15c] sm:$0xf]
    %v481 = vld [vmem:[%s41 + $0x160] sm:$0xf]
    %v482 = vld [vmem:[%s41 + $0x164] sm:$0xf]
    %v483 = vld [vmem:[%s41 + $0x168] sm:$0xf]
    %v484 = vld [vmem:[%s41 + $0x16c] sm:$0xf]
    %v485 = vld [vmem:[%s41 + $0x170] sm:$0xf]
    %v486 = vld [vmem:[%s41 + $0x174] sm:$0xf]
    %v487 = vld [vmem:[%s41 + $0x178] sm:$0xf]
    %v488 = vld [vmem:[%s41 + $0x17c] sm:$0xf]
    %v489 = vld [vmem:[%s41 + $0x180] sm:$0xf]
    %v490 = vld [vmem:[%s41 + $0x184] sm:$0xf]
    %v491 = vld [vmem:[%s41 + $0x188] sm:$0xf]
    %v492 = vld [vmem:[%s41 + $0x18c] sm:$0xf]
    %v493 = vld [vmem:[%s41 + $0x190] sm:$0xf]
    %v494 = vld [vmem:[%s41 + $0x194] sm:$0xf]
    %v495 = vld [vmem:[%s41 + $0x198] sm:$0xf]
    %v496 = vld [vmem:[%s41 + $0x19c] sm:$0xf]
    %v497 = vld [vmem:[%s41 + $0x1a0] sm:$0xf]
    %v498 = vld [vmem:[%s41 + $0x1a4] sm:$0xf]
    %v499 = vld [vmem:[%s41 + $0x1a8] sm:$0xf]
    %v500 = vld [vmem:[%s41 + $0x1ac] sm:$0xf]
    %v501 = vld [vmem:[%s41 + $0x1b0] sm:$0xf]
    %v502 = vld [vmem:[%s41 + $0x1b4] sm:$0xf]
    %v503 = vld [vmem:[%s41 + $0x1b8] sm:$0xf]
    %v504 = vld [vmem:[%s41 + $0x1bc] sm:$0xf]
    %v505 = vld [vmem:[%s41 + $0x1c0] sm:$0xf]
    %v506 = vld [vmem:[%s41 + $0x1c4] sm:$0xf]
    %v507 = vld [vmem:[%s41 + $0x1c8] sm:$0xf]
    %v508 = vld [vmem:[%s41 + $0x1cc] sm:$0xf]
    %v509 = vld [vmem:[%s41 + $0x1d0] sm:$0xf]
    %v510 = vld [vmem:[%s41 + $0x1d4] sm:$0xf]
    %v511 = vld [vmem:[%s41 + $0x1d8] sm:$0xf]
    %v512 = vld [vmem:[%s41 + $0x1dc] sm:$0xf]
    %v513 = vld [vmem:[%s41 + $0x1e0] sm:$0xf]
    %v514 = vld [vmem:[%s41 + $0x1e4] sm:$0xf]
    %v515 = vld [vmem:[%s41 + $0x1e8] sm:$0xf]
    %v516 = vld [vmem:[%s41 + $0x1ec] sm:$0xf]
    %v517 = vld [vmem:[%s41 + $0x1f0] sm:$0xf]
    %v518 = vld [vmem:[%s41 + $0x1f4] sm:$0xf]
    %v519 = vld [vmem:[%s41 + $0x1f8] sm:$0xf]
    %v520 = vld [vmem:[%s41 + $0x1fc] sm:$0xf]
    %v521 = vld [vmem:[%s43] sm:$0x1]
    %v522 = vld [vmem:[%s45] sm:$0x1]
    %v523 = vld [vmem:[%s47] sm:$0x1]
    %v524 = vld [vmem:[%s49] sm:$0xff]
    %v525 = vld [vmem:[%s49 + $0x8] sm:$0xff]
    %v526 = vld [vmem:[%s49 + $0x10] sm:$0xff]
    %v527 = vld [vmem:[%s49 + $0x18] sm:$0xff]
    %v528 = vld [vmem:[%s51] sm:$0x1]
    %v529 = vld [vmem:[%s53] sm:$0x1]
    %v530 = vld [vmem:[%s55] sm:$0x1]
    %v532 = vlaneseq
    %v533 = vshrl.u32 %v532, 7
    %v534 = vsub.s32 0, %v533
    %v535 = vrot.slane %v521, %v534
    %v539 = vcombine.high %v391, %v391
    %v541 = vunpack.c.l.s4 1983009808
    %v542 = vunpack.c.0.s8 %v541
    %v543 = vlaneseq
    %v544 = vshrl.u32 %v543, 7
    %v545 = vsub.s32 %v542, %v544
    %v546 = vrot.slane %v391, %v545
    %v548 = vunpack.c.l.s4 1983009808
    %v549 = vunpack.c.0.s8 %v548
    %v550 = vlaneseq
    %v551 = vshrl.u32 %v550, 7
    %v552 = vsub.s32 %v549, %v551
    %v553 = vrot.slane %v539, %v552
    %v554 = vcombine.high %v546, %v546
    %v555 = vcombine.high %v553, %v553
    %v556 = vcombine.high %v392, %v392
    %v558 = vunpack.c.l.s4 1983009808
    %v559 = vunpack.c.0.s8 %v558
    %v560 = vlaneseq
    %v561 = vshrl.u32 %v560, 7
    %v562 = vsub.s32 %v559, %v561
    %v563 = vrot.slane %v392, %v562
    %v565 = vunpack.c.l.s4 1983009808
    %v566 = vunpack.c.0.s8 %v565
    %v567 = vlaneseq
    %v568 = vshrl.u32 %v567, 7
    %v569 = vsub.s32 %v566, %v568
    %v570 = vrot.slane %v556, %v569
    %v571 = vcombine.high %v563, %v563
    %v572 = vcombine.high %v570, %v570
    %v709 = vunpack.c.l.b16 %v393
    %v710 = vunpack.c.l.b16 %v394
    %v711 = vunpack.c.l.b16 %v395
    %v712 = vunpack.c.l.b16 %v396
    %v713 = vunpack.c.l.b16 %v397
    %v714 = vunpack.c.l.b16 %v398
    %v715 = vunpack.c.l.b16 %v399
    %v716 = vunpack.c.l.b16 %v400
    %v717 = vunpack.c.l.b16 %v401
    %v718 = vunpack.c.l.b16 %v402
    %v719 = vunpack.c.l.b16 %v403
    %v720 = vunpack.c.l.b16 %v404
    %v721 = vunpack.c.l.b16 %v405
    %v722 = vunpack.c.l.b16 %v406
    %v723 = vunpack.c.l.b16 %v407
    %v724 = vunpack.c.l.b16 %v408
    %v725 = vunpack.c.l.b16 %v409
    %v726 = vunpack.c.l.b16 %v410
    %v727 = vunpack.c.l.b16 %v411
    %v728 = vunpack.c.l.b16 %v412
    %v729 = vunpack.c.l.b16 %v413
    %v730 = vunpack.c.l.b16 %v414
    %v731 = vunpack.c.l.b16 %v415
    %v732 = vunpack.c.l.b16 %v416
    %v733 = vunpack.c.l.b16 %v417
    %v734 = vunpack.c.l.b16 %v418
    %v735 = vunpack.c.l.b16 %v419
    %v736 = vunpack.c.l.b16 %v420
    %v737 = vunpack.c.l.b16 %v421
    %v738 = vunpack.c.l.b16 %v422
    %v739 = vunpack.c.l.b16 %v423
    %v740 = vunpack.c.l.b16 %v424
    %v741 = vunpack.c.l.b16 %v425
    %v742 = vunpack.c.l.b16 %v426
    %v743 = vunpack.c.l.b16 %v427
    %v744 = vunpack.c.l.b16 %v428
    %v745 = vunpack.c.l.b16 %v429
    %v746 = vunpack.c.l.b16 %v430
    %v747 = vunpack.c.l.b16 %v431
    %v748 = vunpack.c.l.b16 %v432
    %v749 = vunpack.c.l.b16 %v433
    %v750 = vunpack.c.l.b16 %v434
    %v751 = vunpack.c.l.b16 %v435
    %v752 = vunpack.c.l.b16 %v436
    %v753 = vunpack.c.l.b16 %v437
    %v754 = vunpack.c.l.b16 %v438
    %v755 = vunpack.c.l.b16 %v439
    %v756 = vunpack.c.l.b16 %v440
    %v757 = vunpack.c.l.b16 %v441
    %v758 = vunpack.c.l.b16 %v442
    %v759 = vunpack.c.l.b16 %v443
    %v760 = vunpack.c.l.b16 %v444
    %v761 = vunpack.c.l.b16 %v445
    %v762 = vunpack.c.l.b16 %v446
    %v763 = vunpack.c.l.b16 %v447
    %v764 = vunpack.c.l.b16 %v448
    %v765 = vunpack.c.l.b16 %v449
    %v766 = vunpack.c.l.b16 %v450
    %v767 = vunpack.c.l.b16 %v451
    %v768 = vunpack.c.l.b16 %v452
    %v769 = vunpack.c.l.b16 %v453
    %v770 = vunpack.c.l.b16 %v454
    %v771 = vunpack.c.l.b16 %v455
    %v772 = vunpack.c.l.b16 %v456
    %v773 = vunpack.c.l.b16 %v457
    %v774 = vunpack.c.l.b16 %v458
    %v775 = vunpack.c.l.b16 %v459
    %v776 = vunpack.c.l.b16 %v460
    %v777 = vunpack.c.l.b16 %v461
    %v778 = vunpack.c.l.b16 %v462
    %v779 = vunpack.c.l.b16 %v463
    %v780 = vunpack.c.l.b16 %v464
    %v781 = vunpack.c.l.b16 %v465
    %v782 = vunpack.c.l.b16 %v466
    %v783 = vunpack.c.l.b16 %v467
    %v784 = vunpack.c.l.b16 %v468
    %v785 = vunpack.c.l.b16 %v469
    %v786 = vunpack.c.l.b16 %v470
    %v787 = vunpack.c.l.b16 %v471
    %v788 = vunpack.c.l.b16 %v472
    %v789 = vunpack.c.l.b16 %v473
    %v790 = vunpack.c.l.b16 %v474
    %v791 = vunpack.c.l.b16 %v475
    %v792 = vunpack.c.l.b16 %v476
    %v793 = vunpack.c.l.b16 %v477
    %v794 = vunpack.c.l.b16 %v478
    %v795 = vunpack.c.l.b16 %v479
    %v796 = vunpack.c.l.b16 %v480
    %v797 = vunpack.c.l.b16 %v481
    %v798 = vunpack.c.l.b16 %v482
    %v799 = vunpack.c.l.b16 %v483
    %v800 = vunpack.c.l.b16 %v484
    %v801 = vunpack.c.l.b16 %v485
    %v802 = vunpack.c.l.b16 %v486
    %v803 = vunpack.c.l.b16 %v487
    %v804 = vunpack.c.l.b16 %v488
    %v805 = vunpack.c.l.b16 %v489
    %v806 = vunpack.c.l.b16 %v490
    %v807 = vunpack.c.l.b16 %v491
    %v808 = vunpack.c.l.b16 %v492
    %v809 = vunpack.c.l.b16 %v493
    %v810 = vunpack.c.l.b16 %v494
    %v811 = vunpack.c.l.b16 %v495
    %v812 = vunpack.c.l.b16 %v496
    %v813 = vunpack.c.l.b16 %v497
    %v814 = vunpack.c.l.b16 %v498
    %v815 = vunpack.c.l.b16 %v499
    %v816 = vunpack.c.l.b16 %v500
    %v817 = vunpack.c.l.b16 %v501
    %v818 = vunpack.c.l.b16 %v502
    %v819 = vunpack.c.l.b16 %v503
    %v820 = vunpack.c.l.b16 %v504
    %v821 = vunpack.c.l.b16 %v505
    %v822 = vunpack.c.l.b16 %v506
    %v823 = vunpack.c.l.b16 %v507
    %v824 = vunpack.c.l.b16 %v508
    %v825 = vunpack.c.l.b16 %v509
    %v826 = vunpack.c.l.b16 %v510
    %v827 = vunpack.c.l.b16 %v511
    %v828 = vunpack.c.l.b16 %v512
    %v829 = vunpack.c.l.b16 %v513
    %v830 = vunpack.c.l.b16 %v514
    %v831 = vunpack.c.l.b16 %v515
    %v832 = vunpack.c.l.b16 %v516
    %v833 = vunpack.c.l.b16 %v517
    %v834 = vunpack.c.l.b16 %v518
    %v835 = vunpack.c.l.b16 %v519
    %v836 = vunpack.c.l.b16 %v520
    %v837 = vpack.c.b16 %v710, %v709
    %v838 = vpack.c.b16 %v712, %v711
    %v839 = vpack.c.b16 %v714, %v713
    %v840 = vpack.c.b16 %v716, %v715
    %v841 = vpack.c.b16 %v718, %v717
    %v842 = vpack.c.b16 %v720, %v719
    %v843 = vpack.c.b16 %v722, %v721
    %v844 = vpack.c.b16 %v724, %v723
    %v845 = vpack.c.b16 %v726, %v725
    %v846 = vpack.c.b16 %v728, %v727
    %v847 = vpack.c.b16 %v730, %v729
    %v848 = vpack.c.b16 %v732, %v731
    %v849 = vpack.c.b16 %v734, %v733
    %v850 = vpack.c.b16 %v736, %v735
    %v851 = vpack.c.b16 %v738, %v737
    %v852 = vpack.c.b16 %v740, %v739
    %v853 = vpack.c.b16 %v742, %v741
    %v854 = vpack.c.b16 %v744, %v743
    %v855 = vpack.c.b16 %v746, %v745
    %v856 = vpack.c.b16 %v748, %v747
    %v857 = vpack.c.b16 %v750, %v749
    %v858 = vpack.c.b16 %v752, %v751
    %v859 = vpack.c.b16 %v754, %v753
    %v860 = vpack.c.b16 %v756, %v755
    %v861 = vpack.c.b16 %v758, %v757
    %v862 = vpack.c.b16 %v760, %v759
    %v863 = vpack.c.b16 %v762, %v761
    %v864 = vpack.c.b16 %v764, %v763
    %v865 = vpack.c.b16 %v766, %v765
    %v866 = vpack.c.b16 %v768, %v767
    %v867 = vpack.c.b16 %v770, %v769
    %v868 = vpack.c.b16 %v772, %v771
    %v869 = vpack.c.b16 %v774, %v773
    %v870 = vpack.c.b16 %v776, %v775
    %v871 = vpack.c.b16 %v778, %v777
    %v872 = vpack.c.b16 %v780, %v779
    %v873 = vpack.c.b16 %v782, %v781
    %v874 = vpack.c.b16 %v784, %v783
    %v875 = vpack.c.b16 %v786, %v785
    %v876 = vpack.c.b16 %v788, %v787
    %v877 = vpack.c.b16 %v790, %v789
    %v878 = vpack.c.b16 %v792, %v791
    %v879 = vpack.c.b16 %v794, %v793
    %v880 = vpack.c.b16 %v796, %v795
    %v881 = vpack.c.b16 %v798, %v797
    %v882 = vpack.c.b16 %v800, %v799
    %v883 = vpack.c.b16 %v802, %v801
    %v884 = vpack.c.b16 %v804, %v803
    %v885 = vpack.c.b16 %v806, %v805
    %v886 = vpack.c.b16 %v808, %v807
    %v887 = vpack.c.b16 %v810, %v809
    %v888 = vpack.c.b16 %v812, %v811
    %v889 = vpack.c.b16 %v814, %v813
    %v890 = vpack.c.b16 %v816, %v815
    %v891 = vpack.c.b16 %v818, %v817
    %v892 = vpack.c.b16 %v820, %v819
    %v893 = vpack.c.b16 %v822, %v821
    %v894 = vpack.c.b16 %v824, %v823
    %v895 = vpack.c.b16 %v826, %v825
    %v896 = vpack.c.b16 %v828, %v827
    %v897 = vpack.c.b16 %v830, %v829
    %v898 = vpack.c.b16 %v832, %v831
    %v899 = vpack.c.b16 %v834, %v833
    %v900 = vpack.c.b16 %v836, %v835
    %965 = vmatprep.subr.bf16.mxu0 0
    %966 = vmatpush1.bf16.msra.mxu0 %v837
    %967 = vmatprep.subr.bf16.mxu0 0
    %968 = vmatpush1.bf16.msra.mxu0 %v838
    %969 = vmatprep.subr.bf16.mxu0 0
    %970 = vmatpush1.bf16.msra.mxu0 %v839
    %971 = vmatprep.subr.bf16.mxu0 0
    %972 = vmatpush1.bf16.msra.mxu0 %v840
    %973 = vmatprep.subr.bf16.mxu0 0
    %974 = vmatpush1.bf16.msra.mxu0 %v841
    %975 = vmatprep.subr.bf16.mxu0 0
    %976 = vmatpush1.bf16.msra.mxu0 %v842
    %977 = vmatprep.subr.bf16.mxu0 0
    %978 = vmatpush1.bf16.msra.mxu0 %v843
    %979 = vmatprep.subr.bf16.mxu0 0
    %980 = vmatpush1.bf16.msra.mxu0 %v844
    %981 = vmatprep.subr.bf16.mxu0 0
    %982 = vmatpush1.bf16.msra.mxu0 %v845
    %983 = vmatprep.subr.bf16.mxu0 0
    %984 = vmatpush1.bf16.msra.mxu0 %v846
    %985 = vmatprep.subr.bf16.mxu0 0
    %986 = vmatpush1.bf16.msra.mxu0 %v847
    %987 = vmatprep.subr.bf16.mxu0 0
    %988 = vmatpush1.bf16.msra.mxu0 %v848
    %989 = vmatprep.subr.bf16.mxu0 0
    %990 = vmatpush1.bf16.msra.mxu0 %v849
    %991 = vmatprep.subr.bf16.mxu0 0
    %992 = vmatpush1.bf16.msra.mxu0 %v850
    %993 = vmatprep.subr.bf16.mxu0 0
    %994 = vmatpush1.bf16.msra.mxu0 %v851
    %995 = vmatprep.subr.bf16.mxu0 0
    %996 = vmatpush1.bf16.msra.mxu0 %v852
    %997 = vmatprep.mubr.bf16.mxu0 %v554
    %998 = vmatmul.mubr.bf16.gmra.mrb[0].mxu0 %v546
    %v999 = vpop.f32.mrb[0].mxu0
    %v1000 = vadd.f32 %v535, %v999
    %v1001 = vpop.f32.mrb[0].mxu0
    %v1002 = vpop.f32.mrb[0].mxu0
    %v1003 = vpop.f32.mrb[0].mxu0
    %1004 = vdwg.mxu0
    %1005 = vmatprep.subr.bf16.mxu0 0
    %1006 = vmatpush1.bf16.msra.mxu0 %v853
    %1007 = vmatprep.subr.bf16.mxu0 0
    %1008 = vmatpush1.bf16.msra.mxu0 %v854
    %1009 = vmatprep.subr.bf16.mxu0 0
    %1010 = vmatpush1.bf16.msra.mxu0 %v855
    %1011 = vmatprep.subr.bf16.mxu0 0
    %1012 = vmatpush1.bf16.msra.mxu0 %v856
    %1013 = vmatprep.subr.bf16.mxu0 0
    %1014 = vmatpush1.bf16.msra.mxu0 %v857
    %1015 = vmatprep.subr.bf16.mxu0 0
    %1016 = vmatpush1.bf16.msra.mxu0 %v858
    %1017 = vmatprep.subr.bf16.mxu0 0
    %1018 = vmatpush1.bf16.msra.mxu0 %v859
    %1019 = vmatprep.subr.bf16.mxu0 0
    %1020 = vmatpush1.bf16.msra.mxu0 %v860
    %1021 = vmatprep.subr.bf16.mxu0 0
    %1022 = vmatpush1.bf16.msra.mxu0 %v861
    %1023 = vmatprep.subr.bf16.mxu0 0
    %1024 = vmatpush1.bf16.msra.mxu0 %v862
    %1025 = vmatprep.subr.bf16.mxu0 0
    %1026 = vmatpush1.bf16.msra.mxu0 %v863
    %1027 = vmatprep.subr.bf16.mxu0 0
    %1028 = vmatpush1.bf16.msra.mxu0 %v864
    %1029 = vmatprep.subr.bf16.mxu0 0
    %1030 = vmatpush1.bf16.msra.mxu0 %v865
    %1031 = vmatprep.subr.bf16.mxu0 0
    %1032 = vmatpush1.bf16.msra.mxu0 %v866
    %1033 = vmatprep.subr.bf16.mxu0 0
    %1034 = vmatpush1.bf16.msra.mxu0 %v867
    %1035 = vmatprep.subr.bf16.mxu0 0
    %1036 = vmatpush1.bf16.msra.mxu0 %v868
    %1037 = vmatprep.mubr.bf16.mxu0 %v555
    %1038 = vmatmul.mubr.bf16.gmra.mrb[0].mxu0 %v553
    %v1039 = vpop.f32.mrb[0].mxu0
    %v1040 = vadd.f32 %v1000, %v1039
    %v1041 = vpop.f32.mrb[0].mxu0
    %v1042 = vpop.f32.mrb[0].mxu0
    %v1043 = vpop.f32.mrb[0].mxu0
    %1044 = vdwg.mxu0
    %1045 = vmatprep.subr.bf16.mxu0 0
    %1046 = vmatpush1.bf16.msra.mxu0 %v869
    %1047 = vmatprep.subr.bf16.mxu0 0
    %1048 = vmatpush1.bf16.msra.mxu0 %v870
    %1049 = vmatprep.subr.bf16.mxu0 0
    %1050 = vmatpush1.bf16.msra.mxu0 %v871
    %1051 = vmatprep.subr.bf16.mxu0 0
    %1052 = vmatpush1.bf16.msra.mxu0 %v872
    %1053 = vmatprep.subr.bf16.mxu0 0
    %1054 = vmatpush1.bf16.msra.mxu0 %v873
    %1055 = vmatprep.subr.bf16.mxu0 0
    %1056 = vmatpush1.bf16.msra.mxu0 %v874
    %1057 = vmatprep.subr.bf16.mxu0 0
    %1058 = vmatpush1.bf16.msra.mxu0 %v875
    %1059 = vmatprep.subr.bf16.mxu0 0
    %1060 = vmatpush1.bf16.msra.mxu0 %v876
    %1061 = vmatprep.subr.bf16.mxu0 0
    %1062 = vmatpush1.bf16.msra.mxu0 %v877
    %1063 = vmatprep.subr.bf16.mxu0 0
    %1064 = vmatpush1.bf16.msra.mxu0 %v878
    %1065 = vmatprep.subr.bf16.mxu0 0
    %1066 = vmatpush1.bf16.msra.mxu0 %v879
    %1067 = vmatprep.subr.bf16.mxu0 0
    %1068 = vmatpush1.bf16.msra.mxu0 %v880
    %1069 = vmatprep.subr.bf16.mxu0 0
    %1070 = vmatpush1.bf16.msra.mxu0 %v881
    %1071 = vmatprep.subr.bf16.mxu0 0
    %1072 = vmatpush1.bf16.msra.mxu0 %v882
    %1073 = vmatprep.subr.bf16.mxu0 0
    %1074 = vmatpush1.bf16.msra.mxu0 %v883
    %1075 = vmatprep.subr.bf16.mxu0 0
    %1076 = vmatpush1.bf16.msra.mxu0 %v884
    %1077 = vmatprep.mubr.bf16.mxu0 %v571
    %1078 = vmatmul.mubr.bf16.gmra.mrb[0].mxu0 %v563
    %v1079 = vpop.f32.mrb[0].mxu0
    %v1080 = vadd.f32 %v1040, %v1079
    %v1081 = vpop.f32.mrb[0].mxu0
    %v1082 = vpop.f32.mrb[0].mxu0
    %v1083 = vpop.f32.mrb[0].mxu0
    %1084 = vdwg.mxu0
    %1085 = vmatprep.subr.bf16.mxu0 0
    %1086 = vmatpush1.bf16.msra.mxu0 %v885
    %1087 = vmatprep.subr.bf16.mxu0 0
    %1088 = vmatpush1.bf16.msra.mxu0 %v886
    %1089 = vmatprep.subr.bf16.mxu0 0
    %1090 = vmatpush1.bf16.msra.mxu0 %v887
    %1091 = vmatprep.subr.bf16.mxu0 0
    %1092 = vmatpush1.bf16.msra.mxu0 %v888
    %1093 = vmatprep.subr.bf16.mxu0 0
    %1094 = vmatpush1.bf16.msra.mxu0 %v889
    %1095 = vmatprep.subr.bf16.mxu0 0
    %1096 = vmatpush1.bf16.msra.mxu0 %v890
    %1097 = vmatprep.subr.bf16.mxu0 0
    %1098 = vmatpush1.bf16.msra.mxu0 %v891
    %1099 = vmatprep.subr.bf16.mxu0 0
    %1100 = vmatpush1.bf16.msra.mxu0 %v892
    %1101 = vmatprep.subr.bf16.mxu0 0
    %1102 = vmatpush1.bf16.msra.mxu0 %v893
    %1103 = vmatprep.subr.bf16.mxu0 0
    %1104 = vmatpush1.bf16.msra.mxu0 %v894
    %1105 = vmatprep.subr.bf16.mxu0 0
    %1106 = vmatpush1.bf16.msra.mxu0 %v895
    %1107 = vmatprep.subr.bf16.mxu0 0
    %1108 = vmatpush1.bf16.msra.mxu0 %v896
    %1109 = vmatprep.subr.bf16.mxu0 0
    %1110 = vmatpush1.bf16.msra.mxu0 %v897
    %1111 = vmatprep.subr.bf16.mxu0 0
    %1112 = vmatpush1.bf16.msra.mxu0 %v898
    %1113 = vmatprep.subr.bf16.mxu0 0
    %1114 = vmatpush1.bf16.msra.mxu0 %v899
    %1115 = vmatprep.subr.bf16.mxu0 0
    %1116 = vmatpush1.bf16.msra.mxu0 %v900
    %1117 = vmatprep.mubr.bf16.mxu0 %v572
    %1118 = vmatmul.mubr.bf16.gmra.mrb[0].mxu0 %v570
    %v1119 = vpop.f32.mrb[0].mxu0
    %v1120 = vadd.f32 %v1080, %v1119
    %v1121 = vpop.f32.mrb[0].mxu0
    %v1122 = vpop.f32.mrb[0].mxu0
    %v1123 = vpop.f32.mrb[0].mxu0
    %1124 = vdwg.mxu0
    %v1125 = vmax.f32 %v1120, 0.0
    %vm1126 = vcmask 257024
    %v1127 = vsel %vm1126, %v1125, 0.0
    %1128 = vadd.xlane.f32.xlu0 %v1127
    %v1129 = vpop.xlane.xlu0 %1128
    %v1130 = vmul.f32 %v1129, %v257
    %v1131 = vsub.f32 %v1125, %v1130
    %v1132 = vmul.f32 %v1131, %v1131
    %v1133 = vsel %vm1126, %v1132, 0.0
    %1134 = vadd.xlane.f32.xlu0 %v1133
    %v1135 = vpop.xlane.xlu0 %1134
    %v1136 = vmul.f32 %v1135, %v257
    %v1137 = vadd.f32 %v1136, 1e-05
    %v1138 = vrsqrt.pop %v1137
    %v1139 = vmul.f32 %v1131, %v1138
    %v1141 = vlaneseq
    %v1142 = vshrl.u32 %v1141, 7
    %v1143 = vsub.s32 0, %v1142
    %v1144 = vrot.slane %v522, %v1143
    %v1146 = vmul.f32 %v1139, %v1144
    %v1148 = vlaneseq
    %v1149 = vshrl.u32 %v1148, 7
    %v1150 = vsub.s32 0, %v1149
    %v1151 = vrot.slane %v523, %v1150
    %v1153 = vadd.f32 %v1146, %v1151
    %v1155 = vlaneseq
    %v1156 = vshrl.u32 %v1155, 7
    %v1157 = vsub.s32 0, %v1156
    %v1158 = vrot.slane %v528, %v1157
    %v1161 = vsel %vm288, %v1153, 0
    %1163 = vmatprep.subr.mxu0 0.0
    %1164 = vmatpush1.msra.mxu0 %v524
    %1165 = vmatprep.subr.mxu0 0.0
    %1166 = vmatpush1.msra.mxu0 %v525
    %1167 = vmatprep.subr.mxu0 0.0
    %1168 = vmatpush1.msra.mxu0 %v526
    %1169 = vmatprep.subr.mxu0 0.0
    %1170 = vmatpush1.msra.mxu0 %v527
    %1171 = vmatprep.subr.mxu0 0.0
    %1172 = vmatpush1.msra.mxu0 0.0
    %1173 = vmatprep.subr.mxu0 0.0
    %1174 = vmatpush1.msra.mxu0 0.0
    %1175 = vmatprep.subr.mxu0 0.0
    %1176 = vmatpush1.msra.mxu0 0.0
    %1177 = vmatprep.subr.mxu0 0.0
    %1178 = vmatpush1.msra.mxu0 0.0
    %1179 = vmatprep.subr.mxu0 0.0
    %1180 = vmatpush1.msra.mxu0 0.0
    %1181 = vmatprep.subr.mxu0 0.0
    %1182 = vmatpush1.msra.mxu0 0.0
    %1183 = vmatprep.subr.mxu0 0.0
    %1184 = vmatpush1.msra.mxu0 0.0
    %1185 = vmatprep.subr.mxu0 0.0
    %1186 = vmatpush1.msra.mxu0 0.0
    %1187 = vmatprep.subr.mxu0 0.0
    %1188 = vmatpush1.msra.mxu0 0.0
    %1189 = vmatprep.subr.mxu0 0.0
    %1190 = vmatpush1.msra.mxu0 0.0
    %1191 = vmatprep.subr.mxu0 0.0
    %1192 = vmatpush1.msra.mxu0 0.0
    %1193 = vmatprep.subr.mxu0 0.0
    %1194 = vmatpush1.msra.mxu0 0.0
    %1195 = vmatprep.subr.mxu0 0.0
    %1196 = vmatpush1.msra.mxu0 0.0
    %1197 = vmatprep.subr.mxu0 0.0
    %1198 = vmatpush1.msra.mxu0 0.0
    %1199 = vmatprep.subr.mxu0 0.0
    %1200 = vmatpush1.msra.mxu0 0.0
    %1201 = vmatprep.subr.mxu0 0.0
    %1202 = vmatpush1.msra.mxu0 0.0
    %1203 = vmatprep.subr.mxu0 0.0
    %1204 = vmatpush1.msra.mxu0 0.0
    %1205 = vmatprep.subr.mxu0 0.0
    %1206 = vmatpush1.msra.mxu0 0.0
    %1207 = vmatprep.subr.mxu0 0.0
    %1208 = vmatpush1.msra.mxu0 0.0
    %1209 = vmatprep.subr.mxu0 0.0
    %1210 = vmatpush1.msra.mxu0 0.0
    %1211 = vmatprep.subr.mxu0 0.0
    %1212 = vmatpush1.msra.mxu0 0.0
    %1213 = vmatprep.subr.mxu0 0.0
    %1214 = vmatpush1.msra.mxu0 0.0
    %1215 = vmatprep.subr.mxu0 0.0
    %1216 = vmatpush1.msra.mxu0 0.0
    %1217 = vmatprep.subr.mxu0 0.0
    %1218 = vmatpush1.msra.mxu0 0.0
    %1219 = vmatprep.subr.mxu0 0.0
    %1220 = vmatpush1.msra.mxu0 0.0
    %1221 = vmatprep.subr.mxu0 0.0
    %1222 = vmatpush1.msra.mxu0 0.0
    %1223 = vmatprep.subr.mxu0 0.0
    %1224 = vmatpush1.msra.mxu0 0.0
    %1225 = vmatprep.subr.mxu0 0.0
    %1226 = vmatpush1.msra.mxu0 0.0
    %1227 = vmatprep.mubr.f32.mxu0 0.0
    %1228 = vmatmul.mubr.f32.gmra.mrb[0].mxu0 %v1161
    %v1229 = vpop.f32.mrb[0].mxu0
    %v1230 = vadd.f32 %v1158, %v1229
    %v1231 = vpop.f32.mrb[0].mxu0
    %1232 = vdwg.mxu0
    %v1233 = vmax.f32 %v1230, 0.0
    %v1234 = vsel %vm1126, %v1233, 0.0
    %1235 = vadd.xlane.f32.xlu0 %v1234
    %v1236 = vpop.xlane.xlu0 %1235
    %v1237 = vmul.f32 %v1236, %v257
    %v1238 = vsub.f32 %v1233, %v1237
    %v1239 = vmul.f32 %v1238, %v1238
    %v1240 = vsel %vm1126, %v1239, 0.0
    %1241 = vadd.xlane.f32.xlu0 %v1240
    %v1242 = vpop.xlane.xlu0 %1241
    %v1243 = vmul.f32 %v1242, %v257
    %v1244 = vadd.f32 %v1243, 1e-05
    %v1245 = vrsqrt.pop %v1244
    %v1246 = vmul.f32 %v1238, %v1245
    %v1248 = vlaneseq
    %v1249 = vshrl.u32 %v1248, 7
    %v1250 = vsub.s32 0, %v1249
    %v1251 = vrot.slane %v529, %v1250
    %v1253 = vmul.f32 %v1246, %v1251
    %v1255 = vlaneseq
    %v1256 = vshrl.u32 %v1255, 7
    %v1257 = vsub.s32 0, %v1256
    %v1258 = vrot.slane %v530, %v1257
    %v1260 = vadd.f32 %v1253, %v1258
    %v1261 = vadd.f32 %v1153, %v1260
    %v1262 = vld [vmem:[#allocation2] sm:$0x1]
    %v1263 = vld [vmem:[#allocation3] sm:$0x1]
    %v1264 = vld [vmem:[#allocation4] sm:$0x1]
    %v1265 = vlaneseq
    %v1266 = vshrl.u32 %v1265, 7
    %v1267 = vlaneseq
    %v1268 = vand.u32 %v1267, 127
    %v1269 = vadd.s32 %v1266, 4
    %vm1270 = vcmp.eq.s32.totalorder %v1269, %v1268
    %v1271 = vsel %vm1270, 1, 0
    %v1272 = vcvt.s32.f32 %v1271
    %v1273 = vadd.s32 %v1266, 10
    %vm1274 = vcmp.eq.s32.totalorder %v1273, %v1268
    %v1275 = vsel %vm1274, 1, 0
    %v1276 = vcvt.s32.f32 %v1275
    %vm1277 = vcmask 113664
    %v1279 = vsel %vm1277, %v1272, 0
    %vm1281 = vcmask 1045504
    %v1283 = vsel %vm1281, %v154, 0
    %1285 = vmatprep.subr.mxu0 0.0
    %1286 = vmatpush1.msra.mxu0 %v153
    %1287 = vmatprep.subr.mxu0 0.0
    %1288 = vmatpush1.msra.mxu0 %v1283
    %1289 = vmatprep.subr.mxu0 0.0
    %1290 = vmatpush1.msra.mxu0 0.0
    %1291 = vmatprep.subr.mxu0 0.0
    %1292 = vmatpush1.msra.mxu0 0.0
    %1293 = vmatprep.subr.mxu0 0.0
    %1294 = vmatpush1.msra.mxu0 0.0
    %1295 = vmatprep.subr.mxu0 0.0
    %1296 = vmatpush1.msra.mxu0 0.0
    %1297 = vmatprep.subr.mxu0 0.0
    %1298 = vmatpush1.msra.mxu0 0.0
    %1299 = vmatprep.subr.mxu0 0.0
    %1300 = vmatpush1.msra.mxu0 0.0
    %1301 = vmatprep.subr.mxu0 0.0
    %1302 = vmatpush1.msra.mxu0 0.0
    %1303 = vmatprep.subr.mxu0 0.0
    %1304 = vmatpush1.msra.mxu0 0.0
    %1305 = vmatprep.subr.mxu0 0.0
    %1306 = vmatpush1.msra.mxu0 0.0
    %1307 = vmatprep.subr.mxu0 0.0
    %1308 = vmatpush1.msra.mxu0 0.0
    %1309 = vmatprep.subr.mxu0 0.0
    %1310 = vmatpush1.msra.mxu0 0.0
    %1311 = vmatprep.subr.mxu0 0.0
    %1312 = vmatpush1.msra.mxu0 0.0
    %1313 = vmatprep.subr.mxu0 0.0
    %1314 = vmatpush1.msra.mxu0 0.0
    %1315 = vmatprep.subr.mxu0 0.0
    %1316 = vmatpush1.msra.mxu0 0.0
    %1317 = vmatprep.subr.mxu0 0.0
    %1318 = vmatpush1.msra.mxu0 0.0
    %1319 = vmatprep.subr.mxu0 0.0
    %1320 = vmatpush1.msra.mxu0 0.0
    %1321 = vmatprep.subr.mxu0 0.0
    %1322 = vmatpush1.msra.mxu0 0.0
    %1323 = vmatprep.subr.mxu0 0.0
    %1324 = vmatpush1.msra.mxu0 0.0
    %1325 = vmatprep.subr.mxu0 0.0
    %1326 = vmatpush1.msra.mxu0 0.0
    %1327 = vmatprep.subr.mxu0 0.0
    %1328 = vmatpush1.msra.mxu0 0.0
    %1329 = vmatprep.subr.mxu0 0.0
    %1330 = vmatpush1.msra.mxu0 0.0
    %1331 = vmatprep.subr.mxu0 0.0
    %1332 = vmatpush1.msra.mxu0 0.0
    %1333 = vmatprep.subr.mxu0 0.0
    %1334 = vmatpush1.msra.mxu0 0.0
    %1335 = vmatprep.subr.mxu0 0.0
    %1336 = vmatpush1.msra.mxu0 0.0
    %1337 = vmatprep.subr.mxu0 0.0
    %1338 = vmatpush1.msra.mxu0 0.0
    %1339 = vmatprep.subr.mxu0 0.0
    %1340 = vmatpush1.msra.mxu0 0.0
    %1341 = vmatprep.subr.mxu0 0.0
    %1342 = vmatpush1.msra.mxu0 0.0
    %1343 = vmatprep.subr.mxu0 0.0
    %1344 = vmatpush1.msra.mxu0 0.0
    %1345 = vmatprep.subr.mxu0 0.0
    %1346 = vmatpush1.msra.mxu0 0.0
    %1347 = vmatprep.subr.mxu0 0.0
    %1348 = vmatpush1.msra.mxu0 0.0
    %1349 = vmatprep.mubr.f32.mxu0 0.0
    %1350 = vmatmul.mubr.f32.gmra.mrb[0].mxu0 %v1279
    %v1351 = vpop.f32.mrb[0].mxu0
    %v1352 = vadd.f32 0.0, %v1351
    %v1353 = vpop.f32.mrb[0].mxu0
    %1354 = vdwg.mxu0
    %v1356 = vsel %vm1277, %v1276, 0
    %1358 = vmatprep.subr.mxu0 0.0
    %1359 = vmatpush1.msra.mxu0 %v153
    %1360 = vmatprep.subr.mxu0 0.0
    %1361 = vmatpush1.msra.mxu0 %v1283
    %1362 = vmatprep.subr.mxu0 0.0
    %1363 = vmatpush1.msra.mxu0 0.0
    %1364 = vmatprep.subr.mxu0 0.0
    %1365 = vmatpush1.msra.mxu0 0.0
    %1366 = vmatprep.subr.mxu0 0.0
    %1367 = vmatpush1.msra.mxu0 0.0
    %1368 = vmatprep.subr.mxu0 0.0
    %1369 = vmatpush1.msra.mxu0 0.0
    %1370 = vmatprep.subr.mxu0 0.0
    %1371 = vmatpush1.msra.mxu0 0.0
    %1372 = vmatprep.subr.mxu0 0.0
    %1373 = vmatpush1.msra.mxu0 0.0
    %1374 = vmatprep.subr.mxu0 0.0
    %1375 = vmatpush1.msra.mxu0 0.0
    %1376 = vmatprep.subr.mxu0 0.0
    %1377 = vmatpush1.msra.mxu0 0.0
    %1378 = vmatprep.subr.mxu0 0.0
    %1379 = vmatpush1.msra.mxu0 0.0
    %1380 = vmatprep.subr.mxu0 0.0
    %1381 = vmatpush1.msra.mxu0 0.0
    %1382 = vmatprep.subr.mxu0 0.0
    %1383 = vmatpush1.msra.mxu0 0.0
    %1384 = vmatprep.subr.mxu0 0.0
    %1385 = vmatpush1.msra.mxu0 0.0
    %1386 = vmatprep.subr.mxu0 0.0
    %1387 = vmatpush1.msra.mxu0 0.0
    %1388 = vmatprep.subr.mxu0 0.0
    %1389 = vmatpush1.msra.mxu0 0.0
    %1390 = vmatprep.subr.mxu0 0.0
    %1391 = vmatpush1.msra.mxu0 0.0
    %1392 = vmatprep.subr.mxu0 0.0
    %1393 = vmatpush1.msra.mxu0 0.0
    %1394 = vmatprep.subr.mxu0 0.0
    %1395 = vmatpush1.msra.mxu0 0.0
    %1396 = vmatprep.subr.mxu0 0.0
    %1397 = vmatpush1.msra.mxu0 0.0
    %1398 = vmatprep.subr.mxu0 0.0
    %1399 = vmatpush1.msra.mxu0 0.0
    %1400 = vmatprep.subr.mxu0 0.0
    %1401 = vmatpush1.msra.mxu0 0.0
    %1402 = vmatprep.subr.mxu0 0.0
    %1403 = vmatpush1.msra.mxu0 0.0
    %1404 = vmatprep.subr.mxu0 0.0
    %1405 = vmatpush1.msra.mxu0 0.0
    %1406 = vmatprep.subr.mxu0 0.0
    %1407 = vmatpush1.msra.mxu0 0.0
    %1408 = vmatprep.subr.mxu0 0.0
    %1409 = vmatpush1.msra.mxu0 0.0
    %1410 = vmatprep.subr.mxu0 0.0
    %1411 = vmatpush1.msra.mxu0 0.0
    %1412 = vmatprep.subr.mxu0 0.0
    %1413 = vmatpush1.msra.mxu0 0.0
    %1414 = vmatprep.subr.mxu0 0.0
    %1415 = vmatpush1.msra.mxu0 0.0
    %1416 = vmatprep.subr.mxu0 0.0
    %1417 = vmatpush1.msra.mxu0 0.0
    %1418 = vmatprep.subr.mxu0 0.0
    %1419 = vmatpush1.msra.mxu0 0.0
    %1420 = vmatprep.subr.mxu0 0.0
    %1421 = vmatpush1.msra.mxu0 0.0
    %1422 = vmatprep.mubr.f32.mxu0 0.0
    %1423 = vmatmul.mubr.f32.gmra.mrb[0].mxu0 %v1356
    %v1424 = vpop.f32.mrb[0].mxu0
    %v1425 = vadd.f32 0.0, %v1424
    %v1426 = vpop.f32.mrb[0].mxu0
    %1427 = vdwg.mxu0
    %v1429 = vlaneseq
    %v1430 = vshrl.u32 %v1429, 7
    %v1431 = vsub.s32 0, %v1430
    %v1432 = vrot.slane %v1263, %v1431
    %1433 = vset.pattern.permute.xlu0 0
    %1434 = vperm.xlu0 %1433, %v1432
    %v1435 = vpop.permute.xlu0 %1434
    %v1437 = vmul.f32 %v1435, %v1352
    %v1438 = vsub.f32 1.0, %v1263
    %v1440 = vlaneseq
    %v1441 = vshrl.u32 %v1440, 7
    %v1442 = vsub.s32 0, %v1441
    %v1443 = vrot.slane %v1438, %v1442
    %1444 = vset.pattern.permute.xlu0 0
    %1445 = vperm.xlu0 %1444, %v1443
    %v1446 = vpop.permute.xlu0 %1445
    %v1448 = vmul.f32 %v1446, %v390
    %v1449 = vadd.f32 %v1437, %v1448
    %v1451 = vlaneseq
    %v1452 = vshrl.u32 %v1451, 7
    %v1453 = vsub.s32 0, %v1452
    %v1454 = vrot.slane %v1264, %v1453
    %1455 = vset.pattern.permute.xlu0 0
    %1456 = vperm.xlu0 %1455, %v1454
    %v1457 = vpop.permute.xlu0 %1456
    %v1459 = vmul.f32 %v1457, %v1425
    %v1460 = vsub.f32 1.0, %v1264
    %v1462 = vlaneseq
    %v1463 = vshrl.u32 %v1462, 7
    %v1464 = vsub.s32 0, %v1463
    %v1465 = vrot.slane %v1460, %v1464
    %1466 = vset.pattern.permute.xlu0 0
    %1467 = vperm.xlu0 %1466, %v1465
    %v1468 = vpop.permute.xlu0 %1467
    %v1470 = vmul.f32 %v1468, %v1261
    %v1471 = vadd.f32 %v1459, %v1470
    %v1472 = vld [vmem:[%s1] sm:$0xff]
    %v1473 = vld [vmem:[%s3] sm:$0xff]
    %1474 = vset.pattern.permute.xlu0 0
    %1475 = vperm.xlu0 %1474, %v1472
    %v1476 = vpop.permute.xlu0 %1475
    %vm1477 = vcmp.eq.s32.totalorder %v1268, %v1476
    %v1478 = vsel %vm1477, 1, 0
    %v1479 = vcvt.s32.f32 %v1478
    %v1481 = vsel %vm1277, %v1479, 0
    %1483 = vmatprep.subr.mxu0 0.0
    %1484 = vmatpush1.msra.mxu0 %v153
    %1485 = vmatprep.subr.mxu0 0.0
    %1486 = vmatpush1.msra.mxu0 %v1283
    %1487 = vmatprep.subr.mxu0 0.0
    %1488 = vmatpush1.msra.mxu0 0.0
    %1489 = vmatprep.subr.mxu0 0.0
    %1490 = vmatpush1.msra.mxu0 0.0
    %1491 = vmatprep.subr.mxu0 0.0
    %1492 = vmatpush1.msra.mxu0 0.0
    %1493 = vmatprep.subr.mxu0 0.0
    %1494 = vmatpush1.msra.mxu0 0.0
    %1495 = vmatprep.subr.mxu0 0.0
    %1496 = vmatpush1.msra.mxu0 0.0
    %1497 = vmatprep.subr.mxu0 0.0
    %1498 = vmatpush1.msra.mxu0 0.0
    %1499 = vmatprep.subr.mxu0 0.0
    %1500 = vmatpush1.msra.mxu0 0.0
    %1501 = vmatprep.subr.mxu0 0.0
    %1502 = vmatpush1.msra.mxu0 0.0
    %1503 = vmatprep.subr.mxu0 0.0
    %1504 = vmatpush1.msra.mxu0 0.0
    %1505 = vmatprep.subr.mxu0 0.0
    %1506 = vmatpush1.msra.mxu0 0.0
    %1507 = vmatprep.subr.mxu0 0.0
    %1508 = vmatpush1.msra.mxu0 0.0
    %1509 = vmatprep.subr.mxu0 0.0
    %1510 = vmatpush1.msra.mxu0 0.0
    %1511 = vmatprep.subr.mxu0 0.0
    %1512 = vmatpush1.msra.mxu0 0.0
    %1513 = vmatprep.subr.mxu0 0.0
    %1514 = vmatpush1.msra.mxu0 0.0
    %1515 = vmatprep.subr.mxu0 0.0
    %1516 = vmatpush1.msra.mxu0 0.0
    %1517 = vmatprep.subr.mxu0 0.0
    %1518 = vmatpush1.msra.mxu0 0.0
    %1519 = vmatprep.subr.mxu0 0.0
    %1520 = vmatpush1.msra.mxu0 0.0
    %1521 = vmatprep.subr.mxu0 0.0
    %1522 = vmatpush1.msra.mxu0 0.0
    %1523 = vmatprep.subr.mxu0 0.0
    %1524 = vmatpush1.msra.mxu0 0.0
    %1525 = vmatprep.subr.mxu0 0.0
    %1526 = vmatpush1.msra.mxu0 0.0
    %1527 = vmatprep.subr.mxu0 0.0
    %1528 = vmatpush1.msra.mxu0 0.0
    %1529 = vmatprep.subr.mxu0 0.0
    %1530 = vmatpush1.msra.mxu0 0.0
    %1531 = vmatprep.subr.mxu0 0.0
    %1532 = vmatpush1.msra.mxu0 0.0
    %1533 = vmatprep.subr.mxu0 0.0
    %1534 = vmatpush1.msra.mxu0 0.0
    %1535 = vmatprep.subr.mxu0 0.0
    %1536 = vmatpush1.msra.mxu0 0.0
    %1537 = vmatprep.subr.mxu0 0.0
    %1538 = vmatpush1.msra.mxu0 0.0
    %1539 = vmatprep.subr.mxu0 0.0
    %1540 = vmatpush1.msra.mxu0 0.0
    %1541 = vmatprep.subr.mxu0 0.0
    %1542 = vmatpush1.msra.mxu0 0.0
    %1543 = vmatprep.subr.mxu0 0.0
    %1544 = vmatpush1.msra.mxu0 0.0
    %1545 = vmatprep.subr.mxu0 0.0
    %1546 = vmatpush1.msra.mxu0 0.0
    %1547 = vmatprep.mubr.f32.mxu0 0.0
    %1548 = vmatmul.mubr.f32.gmra.mrb[0].mxu0 %v1481
    %v1549 = vpop.f32.mrb[0].mxu0
    %v1550 = vadd.f32 0.0, %v1549
    %v1551 = vpop.f32.mrb[0].mxu0
    %1552 = vdwg.mxu0
    %v1553 = vld [vmem:[%s19] sm:$0xff]
    %v1554 = vld [vmem:[%s19 + $0x8] sm:$0x3f]
    %v1556 = vsel %vm1281, %v1554, 0
    %1558 = vmatprep.subr.mxu0 0.0
    %1559 = vmatpush1.msra.mxu0 %v1553
    %1560 = vmatprep.subr.mxu0 0.0
    %1561 = vmatpush1.msra.mxu0 %v1556
    %1562 = vmatprep.subr.mxu0 0.0
    %1563 = vmatpush1.msra.mxu0 0.0
    %1564 = vmatprep.subr.mxu0 0.0
    %1565 = vmatpush1.msra.mxu0 0.0
    %1566 = vmatprep.subr.mxu0 0.0
    %1567 = vmatpush1.msra.mxu0 0.0
    %1568 = vmatprep.subr.mxu0 0.0
    %1569 = vmatpush1.msra.mxu0 0.0
    %1570 = vmatprep.subr.mxu0 0.0
    %1571 = vmatpush1.msra.mxu0 0.0
    %1572 = vmatprep.subr.mxu0 0.0
    %1573 = vmatpush1.msra.mxu0 0.0
    %1574 = vmatprep.subr.mxu0 0.0
    %1575 = vmatpush1.msra.mxu0 0.0
    %1576 = vmatprep.subr.mxu0 0.0
    %1577 = vmatpush1.msra.mxu0 0.0
    %1578 = vmatprep.subr.mxu0 0.0
    %1579 = vmatpush1.msra.mxu0 0.0
    %1580 = vmatprep.subr.mxu0 0.0
    %1581 = vmatpush1.msra.mxu0 0.0
    %1582 = vmatprep.subr.mxu0 0.0
    %1583 = vmatpush1.msra.mxu0 0.0
    %1584 = vmatprep.subr.mxu0 0.0
    %1585 = vmatpush1.msra.mxu0 0.0
    %1586 = vmatprep.subr.mxu0 0.0
    %1587 = vmatpush1.msra.mxu0 0.0
    %1588 = vmatprep.subr.mxu0 0.0
    %1589 = vmatpush1.msra.mxu0 0.0
    %1590 = vmatprep.subr.mxu0 0.0
    %1591 = vmatpush1.msra.mxu0 0.0
    %1592 = vmatprep.subr.mxu0 0.0
    %1593 = vmatpush1.msra.mxu0 0.0
    %1594 = vmatprep.subr.mxu0 0.0
    %1595 = vmatpush1.msra.mxu0 0.0
    %1596 = vmatprep.subr.mxu0 0.0
    %1597 = vmatpush1.msra.mxu0 0.0
    %1598 = vmatprep.subr.mxu0 0.0
    %1599 = vmatpush1.msra.mxu0 0.0
    %1600 = vmatprep.subr.mxu0 0.0
    %1601 = vmatpush1.msra.mxu0 0.0
    %1602 = vmatprep.subr.mxu0 0.0
    %1603 = vmatpush1.msra.mxu0 0.0
    %1604 = vmatprep.subr.mxu0 0.0
    %1605 = vmatpush1.msra.mxu0 0.0
    %1606 = vmatprep.subr.mxu0 0.0
    %1607 = vmatpush1.msra.mxu0 0.0
    %1608 = vmatprep.subr.mxu0 0.0
    %1609 = vmatpush1.msra.mxu0 0.0
    %1610 = vmatprep.subr.mxu0 0.0
    %1611 = vmatpush1.msra.mxu0 0.0
    %1612 = vmatprep.subr.mxu0 0.0
    %1613 = vmatpush1.msra.mxu0 0.0
    %1614 = vmatprep.subr.mxu0 0.0
    %1615 = vmatpush1.msra.mxu0 0.0
    %1616 = vmatprep.subr.mxu0 0.0
    %1617 = vmatpush1.msra.mxu0 0.0
    %1618 = vmatprep.subr.mxu0 0.0
    %1619 = vmatpush1.msra.mxu0 0.0
    %1620 = vmatprep.subr.mxu0 0.0
    %1621 = vmatpush1.msra.mxu0 0.0
    %1622 = vmatprep.mubr.f32.mxu0 0.0
    %1623 = vmatmul.mubr.f32.gmra.mrb[0].mxu0 %v1481
    %v1624 = vpop.f32.mrb[0].mxu0
    %v1625 = vadd.f32 0.0, %v1624
    %v1626 = vpop.f32.mrb[0].mxu0
    %1627 = vdwg.mxu0
    %v1629 = vlaneseq
    %v1630 = vshrl.u32 %v1629, 7
    %v1631 = vsub.s32 0, %v1630
    %v1632 = vrot.slane %v1262, %v1631
    %1633 = vset.pattern.permute.xlu0 0
    %1634 = vperm.xlu0 %1633, %v1632
    %v1635 = vpop.permute.xlu0 %1634
    %v1637 = vmul.f32 %v1635, %v1550
    %v1638 = vsub.f32 1.0, %v1262
    %v1640 = vlaneseq
    %v1641 = vshrl.u32 %v1640, 7
    %v1642 = vsub.s32 0, %v1641
    %v1643 = vrot.slane %v1638, %v1642
    %1644 = vset.pattern.permute.xlu0 0
    %1645 = vperm.xlu0 %1644, %v1643
    %v1646 = vpop.permute.xlu0 %1645
    %v1648 = vmul.f32 %v1646, %v1625
    %v1649 = vadd.f32 %v1637, %v1648
    %v1650 = vsub.s32 %v1472, 4
    %1651 = vset.pattern.permute.xlu0 0
    %1652 = vperm.xlu0 %1651, %v1650
    %v1653 = vpop.permute.xlu0 %1652
    %vm1654 = vcmp.eq.s32.totalorder %v1268, %v1653
    %v1655 = vsel %vm1654, 1, 0
    %v1656 = vcvt.s32.f32 %v1655
    %vm1657 = vcmask 48128
    %v1659 = vsel %vm1657, %v1656, 0
    %v1662 = vsel %vm1281, %v1449, 0
    %1664 = vmatprep.subr.mxu0 0.0
    %1665 = vmatpush1.msra.mxu0 %v1662
    %1666 = vmatprep.subr.mxu0 0.0
    %1667 = vmatpush1.msra.mxu0 0.0
    %1668 = vmatprep.subr.mxu0 0.0
    %1669 = vmatpush1.msra.mxu0 0.0
    %1670 = vmatprep.subr.mxu0 0.0
    %1671 = vmatpush1.msra.mxu0 0.0
    %1672 = vmatprep.subr.mxu0 0.0
    %1673 = vmatpush1.msra.mxu0 0.0
    %1674 = vmatprep.subr.mxu0 0.0
    %1675 = vmatpush1.msra.mxu0 0.0
    %1676 = vmatprep.subr.mxu0 0.0
    %1677 = vmatpush1.msra.mxu0 0.0
    %1678 = vmatprep.subr.mxu0 0.0
    %1679 = vmatpush1.msra.mxu0 0.0
    %1680 = vmatprep.subr.mxu0 0.0
    %1681 = vmatpush1.msra.mxu0 0.0
    %1682 = vmatprep.subr.mxu0 0.0
    %1683 = vmatpush1.msra.mxu0 0.0
    %1684 = vmatprep.subr.mxu0 0.0
    %1685 = vmatpush1.msra.mxu0 0.0
    %1686 = vmatprep.subr.mxu0 0.0
    %1687 = vmatpush1.msra.mxu0 0.0
    %1688 = vmatprep.subr.mxu0 0.0
    %1689 = vmatpush1.msra.mxu0 0.0
    %1690 = vmatprep.subr.mxu0 0.0
    %1691 = vmatpush1.msra.mxu0 0.0
    %1692 = vmatprep.subr.mxu0 0.0
    %1693 = vmatpush1.msra.mxu0 0.0
    %1694 = vmatprep.subr.mxu0 0.0
    %1695 = vmatpush1.msra.mxu0 0.0
    %1696 = vmatprep.subr.mxu0 0.0
    %1697 = vmatpush1.msra.mxu0 0.0
    %1698 = vmatprep.subr.mxu0 0.0
    %1699 = vmatpush1.msra.mxu0 0.0
    %1700 = vmatprep.subr.mxu0 0.0
    %1701 = vmatpush1.msra.mxu0 0.0
    %1702 = vmatprep.subr.mxu0 0.0
    %1703 = vmatpush1.msra.mxu0 0.0
    %1704 = vmatprep.subr.mxu0 0.0
    %1705 = vmatpush1.msra.mxu0 0.0
    %1706 = vmatprep.subr.mxu0 0.0
    %1707 = vmatpush1.msra.mxu0 0.0
    %1708 = vmatprep.subr.mxu0 0.0
    %1709 = vmatpush1.msra.mxu0 0.0
    %1710 = vmatprep.subr.mxu0 0.0
    %1711 = vmatpush1.msra.mxu0 0.0
    %1712 = vmatprep.subr.mxu0 0.0
    %1713 = vmatpush1.msra.mxu0 0.0
    %1714 = vmatprep.subr.mxu0 0.0
    %1715 = vmatpush1.msra.mxu0 0.0
    %1716 = vmatprep.subr.mxu0 0.0
    %1717 = vmatpush1.msra.mxu0 0.0
    %1718 = vmatprep.subr.mxu0 0.0
    %1719 = vmatpush1.msra.mxu0 0.0
    %1720 = vmatprep.subr.mxu0 0.0
    %1721 = vmatpush1.msra.mxu0 0.0
    %1722 = vmatprep.subr.mxu0 0.0
    %1723 = vmatpush1.msra.mxu0 0.0
    %1724 = vmatprep.subr.mxu0 0.0
    %1725 = vmatpush1.msra.mxu0 0.0
    %1726 = vmatprep.subr.mxu0 0.0
    %1727 = vmatpush1.msra.mxu0 0.0
    %1728 = vmatprep.mubr.f32.mxu0 0.0
    %1729 = vmatmul.mubr.f32.gmra.mrb[0].mxu0 %v1659
    %v1730 = vpop.f32.mrb[0].mxu0
    %v1731 = vadd.f32 0.0, %v1730
    %v1732 = vpop.f32.mrb[0].mxu0
    %1733 = vdwg.mxu0
    %vm1734 = vcmp.lt.s32.totalorder %v1472, 4
    %v1735 = vsel %vm1734, 1, 0
    %v1736 = vcvt.s32.f32 %v1735
    %1738 = vset.pattern.permute.xlu0 0
    %1739 = vperm.xlu0 %1738, %v1736
    %v1740 = vpop.permute.xlu0 %1739
    %v1742 = vmul.f32 %v1740, %v1649
    %v1743 = vsub.f32 1.0, %v1736
    %1745 = vset.pattern.permute.xlu0 0
    %1746 = vperm.xlu0 %1745, %v1743
    %v1747 = vpop.permute.xlu0 %1746
    %v1749 = vmul.f32 %v1747, %v1731
    %v1750 = vadd.f32 %v1742, %v1749
    %1751 = vset.pattern.permute.xlu0 0
    %1752 = vperm.xlu0 %1751, %v1473
    %v1753 = vpop.permute.xlu0 %1752
    %vm1754 = vcmp.eq.s32.totalorder %v1268, %v1753
    %v1755 = vsel %vm1754, 1, 0
    %v1756 = vcvt.s32.f32 %v1755
    %v1757 = vld [vmem:[%s17] sm:$0x3f]
    %v1759 = vsel %vm1657, %v1756, 0
    %v1762 = vsel %vm1281, %v1757, 0
    %1764 = vmatprep.subr.mxu0 0.0
    %1765 = vmatpush1.msra.mxu0 %v1762
    %1766 = vmatprep.subr.mxu0 0.0
    %1767 = vmatpush1.msra.mxu0 0.0
    %1768 = vmatprep.subr.mxu0 0.0
    %1769 = vmatpush1.msra.mxu0 0.0
    %1770 = vmatprep.subr.mxu0 0.0
    %1771 = vmatpush1.msra.mxu0 0.0
    %1772 = vmatprep.subr.mxu0 0.0
    %1773 = vmatpush1.msra.mxu0 0.0
    %1774 = vmatprep.subr.mxu0 0.0
    %1775 = vmatpush1.msra.mxu0 0.0
    %1776 = vmatprep.subr.mxu0 0.0
    %1777 = vmatpush1.msra.mxu0 0.0
    %1778 = vmatprep.subr.mxu0 0.0
    %1779 = vmatpush1.msra.mxu0 0.0
    %1780 = vmatprep.subr.mxu0 0.0
    %1781 = vmatpush1.msra.mxu0 0.0
    %1782 = vmatprep.subr.mxu0 0.0
    %1783 = vmatpush1.msra.mxu0 0.0
    %1784 = vmatprep.subr.mxu0 0.0
    %1785 = vmatpush1.msra.mxu0 0.0
    %1786 = vmatprep.subr.mxu0 0.0
    %1787 = vmatpush1.msra.mxu0 0.0
    %1788 = vmatprep.subr.mxu0 0.0
    %1789 = vmatpush1.msra.mxu0 0.0
    %1790 = vmatprep.subr.mxu0 0.0
    %1791 = vmatpush1.msra.mxu0 0.0
    %1792 = vmatprep.subr.mxu0 0.0
    %1793 = vmatpush1.msra.mxu0 0.0
    %1794 = vmatprep.subr.mxu0 0.0
    %1795 = vmatpush1.msra.mxu0 0.0
    %1796 = vmatprep.subr.mxu0 0.0
    %1797 = vmatpush1.msra.mxu0 0.0
    %1798 = vmatprep.subr.mxu0 0.0
    %1799 = vmatpush1.msra.mxu0 0.0
    %1800 = vmatprep.subr.mxu0 0.0
    %1801 = vmatpush1.msra.mxu0 0.0
    %1802 = vmatprep.subr.mxu0 0.0
    %1803 = vmatpush1.msra.mxu0 0.0
    %1804 = vmatprep.subr.mxu0 0.0
    %1805 = vmatpush1.msra.mxu0 0.0
    %1806 = vmatprep.subr.mxu0 0.0
    %1807 = vmatpush1.msra.mxu0 0.0
    %1808 = vmatprep.subr.mxu0 0.0
    %1809 = vmatpush1.msra.mxu0 0.0
    %1810 = vmatprep.subr.mxu0 0.0
    %1811 = vmatpush1.msra.mxu0 0.0
    %1812 = vmatprep.subr.mxu0 0.0
    %1813 = vmatpush1.msra.mxu0 0.0
    %1814 = vmatprep.subr.mxu0 0.0
    %1815 = vmatpush1.msra.mxu0 0.0
    %1816 = vmatprep.subr.mxu0 0.0
    %1817 = vmatpush1.msra.mxu0 0.0
    %1818 = vmatprep.subr.mxu0 0.0
    %1819 = vmatpush1.msra.mxu0 0.0
    %1820 = vmatprep.subr.mxu0 0.0
    %1821 = vmatpush1.msra.mxu0 0.0
    %1822 = vmatprep.subr.mxu0 0.0
    %1823 = vmatpush1.msra.mxu0 0.0
    %1824 = vmatprep.subr.mxu0 0.0
    %1825 = vmatpush1.msra.mxu0 0.0
    %1826 = vmatprep.subr.mxu0 0.0
    %1827 = vmatpush1.msra.mxu0 0.0
    %1828 = vmatprep.mubr.f32.mxu0 0.0
    %1829 = vmatmul.mubr.f32.gmra.mrb[0].mxu0 %v1759
    %v1830 = vpop.f32.mrb[0].mxu0
    %v1831 = vadd.f32 0.0, %v1830
    %v1832 = vpop.f32.mrb[0].mxu0
    %1833 = vdwg.mxu0
    %v1834 = vmul.f32 %v1750, %v1831
    %v1835 = vadd.s32 %v1266, 8
    %v1836 = vadd.s32 %v1266, 16
    %v1837 = vadd.s32 %v1266, 24
    %v1838 = vadd.s32 %v1266, 32
    %v1839 = vadd.s32 %v1266, 40
    %v1840 = vadd.s32 %v1266, 48
    %v1841 = vadd.s32 %v1266, 56
    %v1842 = vadd.s32 %v1266, 64
    %v1843 = vadd.s32 %v1266, 72
    %v1844 = vadd.s32 %v1266, 80
    %v1845 = vadd.s32 %v1266, 88
    %v1846 = vadd.s32 %v1266, 96
    %v1847 = vadd.s32 %v1266, 104
    %v1848 = vadd.s32 %v1266, 112
    %v1849 = vadd.s32 %v1266, 120
    %vm1850 = vcmp.eq.s32.totalorder %v1266, %v1268
    %vm1851 = vcmp.eq.s32.totalorder %v1835, %v1268
    %vm1852 = vcmp.eq.s32.totalorder %v1836, %v1268
    %vm1853 = vcmp.eq.s32.totalorder %v1837, %v1268
    %vm1854 = vcmp.eq.s32.totalorder %v1838, %v1268
    %vm1855 = vcmp.eq.s32.totalorder %v1839, %v1268
    %vm1856 = vcmp.eq.s32.totalorder %v1840, %v1268
    %vm1857 = vcmp.eq.s32.totalorder %v1841, %v1268
    %vm1858 = vcmp.eq.s32.totalorder %v1842, %v1268
    %vm1859 = vcmp.eq.s32.totalorder %v1843, %v1268
    %vm1860 = vcmp.eq.s32.totalorder %v1844, %v1268
    %vm1861 = vcmp.eq.s32.totalorder %v1845, %v1268
    %vm1862 = vcmp.eq.s32.totalorder %v1846, %v1268
    %vm1863 = vcmp.eq.s32.totalorder %v1847, %v1268
    %vm1864 = vcmp.eq.s32.totalorder %v1848, %v1268
    %vm1865 = vcmp.eq.s32.totalorder %v1849, %v1268
    %v1866 = vsel %vm1850, 1, 0
    %v1867 = vsel %vm1851, 1, 0
    %v1868 = vsel %vm1852, 1, 0
    %v1869 = vsel %vm1853, 1, 0
    %v1870 = vsel %vm1854, 1, 0
    %v1871 = vsel %vm1855, 1, 0
    %v1872 = vsel %vm1856, 1, 0
    %v1873 = vsel %vm1857, 1, 0
    %v1874 = vsel %vm1858, 1, 0
    %v1875 = vsel %vm1859, 1, 0
    %v1876 = vsel %vm1860, 1, 0
    %v1877 = vsel %vm1861, 1, 0
    %v1878 = vsel %vm1862, 1, 0
    %v1879 = vsel %vm1863, 1, 0
    %v1880 = vsel %vm1864, 1, 0
    %v1881 = vsel %vm1865, 1, 0
    %v1882 = vcvt.s32.f32 %v1866
    %v1883 = vcvt.s32.f32 %v1867
    %v1884 = vcvt.s32.f32 %v1868
    %v1885 = vcvt.s32.f32 %v1869
    %v1886 = vcvt.s32.f32 %v1870
    %v1887 = vcvt.s32.f32 %v1871
    %v1888 = vcvt.s32.f32 %v1872
    %v1889 = vcvt.s32.f32 %v1873
    %v1890 = vcvt.s32.f32 %v1874
    %v1891 = vcvt.s32.f32 %v1875
    %v1892 = vcvt.s32.f32 %v1876
    %v1893 = vcvt.s32.f32 %v1877
    %v1894 = vcvt.s32.f32 %v1878
    %v1895 = vcvt.s32.f32 %v1879
    %v1896 = vcvt.s32.f32 %v1880
    %v1897 = vcvt.s32.f32 %v1881
    %v1898 = vadd.s32 %v1268, 6
    %vm1899 = vcmp.eq.s32.totalorder %v1266, %v1898
    %vm1900 = vcmp.eq.s32.totalorder %v1835, %v1898
    %vm1901 = vcmp.eq.s32.totalorder %v1836, %v1898
    %vm1902 = vcmp.eq.s32.totalorder %v1837, %v1898
    %vm1903 = vcmp.eq.s32.totalorder %v1838, %v1898
    %vm1904 = vcmp.eq.s32.totalorder %v1839, %v1898
    %vm1905 = vcmp.eq.s32.totalorder %v1840, %v1898
    %vm1906 = vcmp.eq.s32.totalorder %v1841, %v1898
    %vm1907 = vcmp.eq.s32.totalorder %v1842, %v1898
    %vm1908 = vcmp.eq.s32.totalorder %v1843, %v1898
    %vm1909 = vcmp.eq.s32.totalorder %v1844, %v1898
    %vm1910 = vcmp.eq.s32.totalorder %v1845, %v1898
    %vm1911 = vcmp.eq.s32.totalorder %v1846, %v1898
    %vm1912 = vcmp.eq.s32.totalorder %v1847, %v1898
    %vm1913 = vcmp.eq.s32.totalorder %v1848, %v1898
    %vm1914 = vcmp.eq.s32.totalorder %v1849, %v1898
    %v1915 = vsel %vm1899, 1, 0
    %v1916 = vsel %vm1900, 1, 0
    %v1917 = vsel %vm1901, 1, 0
    %v1918 = vsel %vm1902, 1, 0
    %v1919 = vsel %vm1903, 1, 0
    %v1920 = vsel %vm1904, 1, 0
    %v1921 = vsel %vm1905, 1, 0
    %v1922 = vsel %vm1906, 1, 0
    %v1923 = vsel %vm1907, 1, 0
    %v1924 = vsel %vm1908, 1, 0
    %v1925 = vsel %vm1909, 1, 0
    %v1926 = vsel %vm1910, 1, 0
    %v1927 = vsel %vm1911, 1, 0
    %v1928 = vsel %vm1912, 1, 0
    %v1929 = vsel %vm1913, 1, 0
    %v1930 = vsel %vm1914, 1, 0
    %v1931 = vcvt.s32.f32 %v1915
    %v1932 = vcvt.s32.f32 %v1916
    %v1933 = vcvt.s32.f32 %v1917
    %v1934 = vcvt.s32.f32 %v1918
    %v1935 = vcvt.s32.f32 %v1919
    %v1936 = vcvt.s32.f32 %v1920
    %v1937 = vcvt.s32.f32 %v1921
    %v1938 = vcvt.s32.f32 %v1922
    %v1939 = vcvt.s32.f32 %v1923
    %v1940 = vcvt.s32.f32 %v1924
    %v1941 = vcvt.s32.f32 %v1925
    %v1942 = vcvt.s32.f32 %v1926
    %v1943 = vcvt.s32.f32 %v1927
    %v1944 = vcvt.s32.f32 %v1928
    %v1945 = vcvt.s32.f32 %v1929
    %v1946 = vcvt.s32.f32 %v1930
    %vm1947 = vcmask 31744
    %v1949 = vsel %vm1947, %v1931, 0
    %v1952 = vsel %vm1947, %v1932, 0
    %v1955 = vsel %vm1947, %v1933, 0
    %v1958 = vsel %vm1947, %v1934, 0
    %v1961 = vsel %vm1947, %v1935, 0
    %v1964 = vsel %vm1947, %v1936, 0
    %v1967 = vsel %vm1947, %v1937, 0
    %v1970 = vsel %vm1947, %v1938, 0
    %v1973 = vsel %vm1947, %v1939, 0
    %v1976 = vsel %vm1947, %v1940, 0
    %v1979 = vsel %vm1947, %v1941, 0
    %v1982 = vsel %vm1947, %v1942, 0
    %v1985 = vsel %vm1947, %v1943, 0
    %v1988 = vsel %vm1947, %v1944, 0
    %v1991 = vsel %vm1947, %v1945, 0
    %v1994 = vsel %vm1947, %v1946, 0
    %vm1996 = vcmask 1043456
    %v1998 = vsel %vm1996, %v1471, 0
    %2000 = vmatprep.subr.mxu0 0.0
    %2001 = vmatpush1.msra.mxu0 %v1998
    %2002 = vmatprep.subr.mxu0 0.0
    %2003 = vmatpush1.msra.mxu0 0.0
    %2004 = vmatprep.subr.mxu0 0.0
    %2005 = vmatpush1.msra.mxu0 0.0
    %2006 = vmatprep.subr.mxu0 0.0
    %2007 = vmatpush1.msra.mxu0 0.0
    %2008 = vmatprep.subr.mxu0 0.0
    %2009 = vmatpush1.msra.mxu0 0.0
    %2010 = vmatprep.subr.mxu0 0.0
    %2011 = vmatpush1.msra.mxu0 0.0
    %2012 = vmatprep.subr.mxu0 0.0
    %2013 = vmatpush1.msra.mxu0 0.0
    %2014 = vmatprep.subr.mxu0 0.0
    %2015 = vmatpush1.msra.mxu0 0.0
    %2016 = vmatprep.subr.mxu0 0.0
    %2017 = vmatpush1.msra.mxu0 0.0
    %2018 = vmatprep.subr.mxu0 0.0
    %2019 = vmatpush1.msra.mxu0 0.0
    %2020 = vmatprep.subr.mxu0 0.0
    %2021 = vmatpush1.msra.mxu0 0.0
    %2022 = vmatprep.subr.mxu0 0.0
    %2023 = vmatpush1.msra.mxu0 0.0
    %2024 = vmatprep.subr.mxu0 0.0
    %2025 = vmatpush1.msra.mxu0 0.0
    %2026 = vmatprep.subr.mxu0 0.0
    %2027 = vmatpush1.msra.mxu0 0.0
    %2028 = vmatprep.subr.mxu0 0.0
    %2029 = vmatpush1.msra.mxu0 0.0
    %2030 = vmatprep.subr.mxu0 0.0
    %2031 = vmatpush1.msra.mxu0 0.0
    %2032 = vmatprep.subr.mxu0 0.0
    %2033 = vmatpush1.msra.mxu0 0.0
    %2034 = vmatprep.subr.mxu0 0.0
    %2035 = vmatpush1.msra.mxu0 0.0
    %2036 = vmatprep.subr.mxu0 0.0
    %2037 = vmatpush1.msra.mxu0 0.0
    %2038 = vmatprep.subr.mxu0 0.0
    %2039 = vmatpush1.msra.mxu0 0.0
    %2040 = vmatprep.subr.mxu0 0.0
    %2041 = vmatpush1.msra.mxu0 0.0
    %2042 = vmatprep.subr.mxu0 0.0
    %2043 = vmatpush1.msra.mxu0 0.0
    %2044 = vmatprep.subr.mxu0 0.0
    %2045 = vmatpush1.msra.mxu0 0.0
    %2046 = vmatprep.subr.mxu0 0.0
    %2047 = vmatpush1.msra.mxu0 0.0
    %2048 = vmatprep.subr.mxu0 0.0
    %2049 = vmatpush1.msra.mxu0 0.0
    %2050 = vmatprep.subr.mxu0 0.0
    %2051 = vmatpush1.msra.mxu0 0.0
    %2052 = vmatprep.subr.mxu0 0.0
    %2053 = vmatpush1.msra.mxu0 0.0
    %2054 = vmatprep.subr.mxu0 0.0
    %2055 = vmatpush1.msra.mxu0 0.0
    %2056 = vmatprep.subr.mxu0 0.0
    %2057 = vmatpush1.msra.mxu0 0.0
    %2058 = vmatprep.subr.mxu0 0.0
    %2059 = vmatpush1.msra.mxu0 0.0
    %2060 = vmatprep.subr.mxu0 0.0
    %2061 = vmatpush1.msra.mxu0 0.0
    %2062 = vmatprep.subr.mxu0 0.0
    %2063 = vmatpush1.msra.mxu0 0.0
    %2064 = vmatprep.mubr.f32.mxu0 0.0
    %2065 = vmatmul.mubr.f32.gmra.mrb[0].mxu0 %v1949
    %v2066 = vpop.f32.mrb[0].mxu0
    %v2067 = vadd.f32 0.0, %v2066
    %v2068 = vpop.f32.mrb[0].mxu0
    %2069 = vmatprep.mubr.f32.mxu0 0.0
    %2070 = vmatmul.mubr.f32.gmra.mrb[0].mxu0 %v1952
    %v2071 = vpop.f32.mrb[0].mxu0
    %v2072 = vadd.f32 0.0, %v2071
    %v2073 = vpop.f32.mrb[0].mxu0
    %2074 = vmatprep.mubr.f32.mxu0 0.0
    %2075 = vmatmul.mubr.f32.gmra.mrb[0].mxu0 %v1955
    %v2076 = vpop.f32.mrb[0].mxu0
    %v2077 = vadd.f32 0.0, %v2076
    %v2078 = vpop.f32.mrb[0].mxu0
    %2079 = vmatprep.mubr.f32.mxu0 0.0
    %2080 = vmatmul.mubr.f32.gmra.mrb[0].mxu0 %v1958
    %v2081 = vpop.f32.mrb[0].mxu0
    %v2082 = vadd.f32 0.0, %v2081
    %v2083 = vpop.f32.mrb[0].mxu0
    %2084 = vmatprep.mubr.f32.mxu0 0.0
    %2085 = vmatmul.mubr.f32.gmra.mrb[0].mxu0 %v1961
    %v2086 = vpop.f32.mrb[0].mxu0
    %v2087 = vadd.f32 0.0, %v2086
    %v2088 = vpop.f32.mrb[0].mxu0
    %2089 = vmatprep.mubr.f32.mxu0 0.0
    %2090 = vmatmul.mubr.f32.gmra.mrb[0].mxu0 %v1964
    %v2091 = vpop.f32.mrb[0].mxu0
    %v2092 = vadd.f32 0.0, %v2091
    %v2093 = vpop.f32.mrb[0].mxu0
    %2094 = vmatprep.mubr.f32.mxu0 0.0
    %2095 = vmatmul.mubr.f32.gmra.mrb[0].mxu0 %v1967
    %v2096 = vpop.f32.mrb[0].mxu0
    %v2097 = vadd.f32 0.0, %v2096
    %v2098 = vpop.f32.mrb[0].mxu0
    %2099 = vmatprep.mubr.f32.mxu0 0.0
    %2100 = vmatmul.mubr.f32.gmra.mrb[0].mxu0 %v1970
    %v2101 = vpop.f32.mrb[0].mxu0
    %v2102 = vadd.f32 0.0, %v2101
    %v2103 = vpop.f32.mrb[0].mxu0
    %2104 = vmatprep.mubr.f32.mxu0 0.0
    %2105 = vmatmul.mubr.f32.gmra.mrb[0].mxu0 %v1973
    %v2106 = vpop.f32.mrb[0].mxu0
    %v2107 = vadd.f32 0.0, %v2106
    %v2108 = vpop.f32.mrb[0].mxu0
    %2109 = vmatprep.mubr.f32.mxu0 0.0
    %2110 = vmatmul.mubr.f32.gmra.mrb[0].mxu0 %v1976
    %v2111 = vpop.f32.mrb[0].mxu0
    %v2112 = vadd.f32 0.0, %v2111
    %v2113 = vpop.f32.mrb[0].mxu0
    %2114 = vmatprep.mubr.f32.mxu0 0.0
    %2115 = vmatmul.mubr.f32.gmra.mrb[0].mxu0 %v1979
    %v2116 = vpop.f32.mrb[0].mxu0
    %v2117 = vadd.f32 0.0, %v2116
    %v2118 = vpop.f32.mrb[0].mxu0
    %2119 = vmatprep.mubr.f32.mxu0 0.0
    %2120 = vmatmul.mubr.f32.gmra.mrb[0].mxu0 %v1982
    %v2121 = vpop.f32.mrb[0].mxu0
    %v2122 = vadd.f32 0.0, %v2121
    %v2123 = vpop.f32.mrb[0].mxu0
    %2124 = vmatprep.mubr.f32.mxu0 0.0
    %2125 = vmatmul.mubr.f32.gmra.mrb[0].mxu0 %v1985
    %v2126 = vpop.f32.mrb[0].mxu0
    %v2127 = vadd.f32 0.0, %v2126
    %v2128 = vpop.f32.mrb[0].mxu0
    %2129 = vmatprep.mubr.f32.mxu0 0.0
    %2130 = vmatmul.mubr.f32.gmra.mrb[0].mxu0 %v1988
    %v2131 = vpop.f32.mrb[0].mxu0
    %v2132 = vadd.f32 0.0, %v2131
    %v2133 = vpop.f32.mrb[0].mxu0
    %2134 = vmatprep.mubr.f32.mxu0 0.0
    %2135 = vmatmul.mubr.f32.gmra.mrb[0].mxu0 %v1991
    %v2136 = vpop.f32.mrb[0].mxu0
    %v2137 = vadd.f32 0.0, %v2136
    %v2138 = vpop.f32.mrb[0].mxu0
    %2139 = vmatprep.mubr.f32.mxu0 0.0
    %2140 = vmatmul.mubr.f32.gmra.mrb[0].mxu0 %v1994
    %v2141 = vpop.f32.mrb[0].mxu0
    %v2142 = vadd.f32 0.0, %v2141
    %v2143 = vpop.f32.mrb[0].mxu0
    %2144 = vdwg.mxu0
    %v2146 = vsel %vm1657, %v1882, 0
    %v2149 = vsel %vm1657, %v1883, 0
    %v2152 = vsel %vm1657, %v1884, 0
    %v2155 = vsel %vm1657, %v1885, 0
    %v2158 = vsel %vm1657, %v1886, 0
    %v2161 = vsel %vm1657, %v1887, 0
    %v2164 = vsel %vm1657, %v1888, 0
    %v2167 = vsel %vm1657, %v1889, 0
    %v2170 = vsel %vm1657, %v1890, 0
    %v2173 = vsel %vm1657, %v1891, 0
    %v2176 = vsel %vm1657, %v1892, 0
    %v2179 = vsel %vm1657, %v1893, 0
    %v2182 = vsel %vm1657, %v1894, 0
    %v2185 = vsel %vm1657, %v1895, 0
    %v2188 = vsel %vm1657, %v1896, 0
    %v2191 = vsel %vm1657, %v1897, 0
    %2193 = vmatprep.subr.mxu0 0.0
    %2194 = vmatpush1.msra.mxu0 %v1662
    %2195 = vmatprep.subr.mxu0 0.0
    %2196 = vmatpush1.msra.mxu0 0.0
    %2197 = vmatprep.subr.mxu0 0.0
    %2198 = vmatpush1.msra.mxu0 0.0
    %2199 = vmatprep.subr.mxu0 0.0
    %2200 = vmatpush1.msra.mxu0 0.0
    %2201 = vmatprep.subr.mxu0 0.0
    %2202 = vmatpush1.msra.mxu0 0.0
    %2203 = vmatprep.subr.mxu0 0.0
    %2204 = vmatpush1.msra.mxu0 0.0
    %2205 = vmatprep.subr.mxu0 0.0
    %2206 = vmatpush1.msra.mxu0 0.0
    %2207 = vmatprep.subr.mxu0 0.0
    %2208 = vmatpush1.msra.mxu0 0.0
    %2209 = vmatprep.subr.mxu0 0.0
    %2210 = vmatpush1.msra.mxu0 0.0
    %2211 = vmatprep.subr.mxu0 0.0
    %2212 = vmatpush1.msra.mxu0 0.0
    %2213 = vmatprep.subr.mxu0 0.0
    %2214 = vmatpush1.msra.mxu0 0.0
    %2215 = vmatprep.subr.mxu0 0.0
    %2216 = vmatpush1.msra.mxu0 0.0
    %2217 = vmatprep.subr.mxu0 0.0
    %2218 = vmatpush1.msra.mxu0 0.0
    %2219 = vmatprep.subr.mxu0 0.0
    %2220 = vmatpush1.msra.mxu0 0.0
    %2221 = vmatprep.subr.mxu0 0.0
    %2222 = vmatpush1.msra.mxu0 0.0
    %2223 = vmatprep.subr.mxu0 0.0
    %2224 = vmatpush1.msra.mxu0 0.0
    %2225 = vmatprep.subr.mxu0 0.0
    %2226 = vmatpush1.msra.mxu0 0.0
    %2227 = vmatprep.subr.mxu0 0.0
    %2228 = vmatpush1.msra.mxu0 0.0
    %2229 = vmatprep.subr.mxu0 0.0
    %2230 = vmatpush1.msra.mxu0 0.0
    %2231 = vmatprep.subr.mxu0 0.0
    %2232 = vmatpush1.msra.mxu0 0.0
    %2233 = vmatprep.subr.mxu0 0.0
    %2234 = vmatpush1.msra.mxu0 0.0
    %2235 = vmatprep.subr.mxu0 0.0
    %2236 = vmatpush1.msra.mxu0 0.0
    %2237 = vmatprep.subr.mxu0 0.0
    %2238 = vmatpush1.msra.mxu0 0.0
    %2239 = vmatprep.subr.mxu0 0.0
    %2240 = vmatpush1.msra.mxu0 0.0
    %2241 = vmatprep.subr.mxu0 0.0
    %2242 = vmatpush1.msra.mxu0 0.0
    %2243 = vmatprep.subr.mxu0 0.0
    %2244 = vmatpush1.msra.mxu0 0.0
    %2245 = vmatprep.subr.mxu0 0.0
    %2246 = vmatpush1.msra.mxu0 0.0
    %2247 = vmatprep.subr.mxu0 0.0
    %2248 = vmatpush1.msra.mxu0 0.0
    %2249 = vmatprep.subr.mxu0 0.0
    %2250 = vmatpush1.msra.mxu0 0.0
    %2251 = vmatprep.subr.mxu0 0.0
    %2252 = vmatpush1.msra.mxu0 0.0
    %2253 = vmatprep.subr.mxu0 0.0
    %2254 = vmatpush1.msra.mxu0 0.0
    %2255 = vmatprep.subr.mxu0 0.0
    %2256 = vmatpush1.msra.mxu0 0.0
    %2257 = vmatprep.mubr.f32.mxu0 0.0
    %2258 = vmatmul.mubr.f32.gmra.mrb[0].mxu0 %v2146
    %v2259 = vpop.f32.mrb[0].mxu0
    %v2260 = vadd.f32 %v2067, %v2259
    %v2261 = vpop.f32.mrb[0].mxu0
    %2262 = vmatprep.mubr.f32.mxu0 0.0
    %2263 = vmatmul.mubr.f32.gmra.mrb[0].mxu0 %v2149
    %v2264 = vpop.f32.mrb[0].mxu0
    %v2265 = vadd.f32 %v2072, %v2264
    %v2266 = vpop.f32.mrb[0].mxu0
    %2267 = vmatprep.mubr.f32.mxu0 0.0
    %2268 = vmatmul.mubr.f32.gmra.mrb[0].mxu0 %v2152
    %v2269 = vpop.f32.mrb[0].mxu0
    %v2270 = vadd.f32 %v2077, %v2269
    %v2271 = vpop.f32.mrb[0].mxu0
    %2272 = vmatprep.mubr.f32.mxu0 0.0
    %2273 = vmatmul.mubr.f32.gmra.mrb[0].mxu0 %v2155
    %v2274 = vpop.f32.mrb[0].mxu0
    %v2275 = vadd.f32 %v2082, %v2274
    %v2276 = vpop.f32.mrb[0].mxu0
    %2277 = vmatprep.mubr.f32.mxu0 0.0
    %2278 = vmatmul.mubr.f32.gmra.mrb[0].mxu0 %v2158
    %v2279 = vpop.f32.mrb[0].mxu0
    %v2280 = vadd.f32 %v2087, %v2279
    %v2281 = vpop.f32.mrb[0].mxu0
    %2282 = vmatprep.mubr.f32.mxu0 0.0
    %2283 = vmatmul.mubr.f32.gmra.mrb[0].mxu0 %v2161
    %v2284 = vpop.f32.mrb[0].mxu0
    %v2285 = vadd.f32 %v2092, %v2284
    %v2286 = vpop.f32.mrb[0].mxu0
    %2287 = vmatprep.mubr.f32.mxu0 0.0
    %2288 = vmatmul.mubr.f32.gmra.mrb[0].mxu0 %v2164
    %v2289 = vpop.f32.mrb[0].mxu0
    %v2290 = vadd.f32 %v2097, %v2289
    %v2291 = vpop.f32.mrb[0].mxu0
    %2292 = vmatprep.mubr.f32.mxu0 0.0
    %2293 = vmatmul.mubr.f32.gmra.mrb[0].mxu0 %v2167
    %v2294 = vpop.f32.mrb[0].mxu0
    %v2295 = vadd.f32 %v2102, %v2294
    %v2296 = vpop.f32.mrb[0].mxu0
    %2297 = vmatprep.mubr.f32.mxu0 0.0
    %2298 = vmatmul.mubr.f32.gmra.mrb[0].mxu0 %v2170
    %v2299 = vpop.f32.mrb[0].mxu0
    %v2300 = vadd.f32 %v2107, %v2299
    %v2301 = vpop.f32.mrb[0].mxu0
    %2302 = vmatprep.mubr.f32.mxu0 0.0
    %2303 = vmatmul.mubr.f32.gmra.mrb[0].mxu0 %v2173
    %v2304 = vpop.f32.mrb[0].mxu0
    %v2305 = vadd.f32 %v2112, %v2304
    %v2306 = vpop.f32.mrb[0].mxu0
    %2307 = vmatprep.mubr.f32.mxu0 0.0
    %2308 = vmatmul.mubr.f32.gmra.mrb[0].mxu0 %v2176
    %v2309 = vpop.f32.mrb[0].mxu0
    %v2310 = vadd.f32 %v2117, %v2309
    %v2311 = vpop.f32.mrb[0].mxu0
    %2312 = vmatprep.mubr.f32.mxu0 0.0
    %2313 = vmatmul.mubr.f32.gmra.mrb[0].mxu0 %v2179
    %v2314 = vpop.f32.mrb[0].mxu0
    %v2315 = vadd.f32 %v2122, %v2314
    %v2316 = vpop.f32.mrb[0].mxu0
    %2317 = vmatprep.mubr.f32.mxu0 0.0
    %2318 = vmatmul.mubr.f32.gmra.mrb[0].mxu0 %v2182
    %v2319 = vpop.f32.mrb[0].mxu0
    %v2320 = vadd.f32 %v2127, %v2319
    %v2321 = vpop.f32.mrb[0].mxu0
    %2322 = vmatprep.mubr.f32.mxu0 0.0
    %2323 = vmatmul.mubr.f32.gmra.mrb[0].mxu0 %v2185
    %v2324 = vpop.f32.mrb[0].mxu0
    %v2325 = vadd.f32 %v2132, %v2324
    %v2326 = vpop.f32.mrb[0].mxu0
    %2327 = vmatprep.mubr.f32.mxu0 0.0
    %2328 = vmatmul.mubr.f32.gmra.mrb[0].mxu0 %v2188
    %v2329 = vpop.f32.mrb[0].mxu0
    %v2330 = vadd.f32 %v2137, %v2329
    %v2331 = vpop.f32.mrb[0].mxu0
    %2332 = vmatprep.mubr.f32.mxu0 0.0
    %2333 = vmatmul.mubr.f32.gmra.mrb[0].mxu0 %v2191
    %v2334 = vpop.f32.mrb[0].mxu0
    %v2335 = vadd.f32 %v2142, %v2334
    %v2336 = vpop.f32.mrb[0].mxu0
    %2337 = vdwg.mxu0
    %v2338 = vld [vmem:[%s57] sm:$0x1]
    %v2340 = vlaneseq
    %v2341 = vshrl.u32 %v2340, 7
    %v2342 = vsub.s32 0, %v2341
    %v2343 = vrot.slane %v2338, %v2342
    %v2346 = vsel %vm288, %v1834, 0
    %v2349 = vsel %vm288, %v2260, 0
    %v2352 = vsel %vm288, %v2265, 0
    %v2355 = vsel %vm288, %v2270, 0
    %v2358 = vsel %vm288, %v2275, 0
    %v2361 = vsel %vm288, %v2280, 0
    %v2364 = vsel %vm288, %v2285, 0
    %v2367 = vsel %vm288, %v2290, 0
    %v2370 = vsel %vm288, %v2295, 0
    %v2373 = vsel %vm288, %v2300, 0
    %v2376 = vsel %vm288, %v2305, 0
    %v2379 = vsel %vm288, %v2310, 0
    %v2382 = vsel %vm288, %v2315, 0
    %v2385 = vsel %vm288, %v2320, 0
    %v2388 = vsel %vm288, %v2325, 0
    %v2391 = vsel %vm288, %v2330, 0
    %v2394 = vsel %vm288, %v2335, 0
    %2396 = vmatprep.subr.mxu0 0.0
    %2397 = vmatpush1.xpose.msra.mxu0 %v2349
    %2398 = vmatprep.subr.mxu0 0.0
    %2399 = vmatpush1.xpose.msra.mxu0 %v2352
    %2400 = vmatprep.subr.mxu0 0.0
    %2401 = vmatpush1.xpose.msra.mxu0 %v2355
    %2402 = vmatprep.subr.mxu0 0.0
    %2403 = vmatpush1.xpose.msra.mxu0 %v2358
    %2404 = vmatprep.subr.mxu0 0.0
    %2405 = vmatpush1.xpose.msra.mxu0 %v2361
    %2406 = vmatprep.subr.mxu0 0.0
    %2407 = vmatpush1.xpose.msra.mxu0 %v2364
    %2408 = vmatprep.subr.mxu0 0.0
    %2409 = vmatpush1.xpose.msra.mxu0 %v2367
    %2410 = vmatprep.subr.mxu0 0.0
    %2411 = vmatpush1.xpose.msra.mxu0 %v2370
    %2412 = vmatprep.subr.mxu0 0.0
    %2413 = vmatpush1.xpose.msra.mxu0 %v2373
    %2414 = vmatprep.subr.mxu0 0.0
    %2415 = vmatpush1.xpose.msra.mxu0 %v2376
    %2416 = vmatprep.subr.mxu0 0.0
    %2417 = vmatpush1.xpose.msra.mxu0 %v2379
    %2418 = vmatprep.subr.mxu0 0.0
    %2419 = vmatpush1.xpose.msra.mxu0 %v2382
    %2420 = vmatprep.subr.mxu0 0.0
    %2421 = vmatpush1.xpose.msra.mxu0 %v2385
    %2422 = vmatprep.subr.mxu0 0.0
    %2423 = vmatpush1.xpose.msra.mxu0 %v2388
    %2424 = vmatprep.subr.mxu0 0.0
    %2425 = vmatpush1.xpose.msra.mxu0 %v2391
    %2426 = vmatprep.subr.mxu0 0.0
    %2427 = vmatpush1.xpose.msra.mxu0 %v2394
    %2428 = vmatprep.subr.mxu0 0.0
    %2429 = vmatpush1.xpose.msra.mxu0 0.0
    %2430 = vmatprep.subr.mxu0 0.0
    %2431 = vmatpush1.xpose.msra.mxu0 0.0
    %2432 = vmatprep.subr.mxu0 0.0
    %2433 = vmatpush1.xpose.msra.mxu0 0.0
    %2434 = vmatprep.subr.mxu0 0.0
    %2435 = vmatpush1.xpose.msra.mxu0 0.0
    %2436 = vmatprep.subr.mxu0 0.0
    %2437 = vmatpush1.xpose.msra.mxu0 0.0
    %2438 = vmatprep.subr.mxu0 0.0
    %2439 = vmatpush1.xpose.msra.mxu0 0.0
    %2440 = vmatprep.subr.mxu0 0.0
    %2441 = vmatpush1.xpose.msra.mxu0 0.0
    %2442 = vmatprep.subr.mxu0 0.0
    %2443 = vmatpush1.xpose.msra.mxu0 0.0
    %2444 = vmatprep.subr.mxu0 0.0
    %2445 = vmatpush1.xpose.msra.mxu0 0.0
    %2446 = vmatprep.subr.mxu0 0.0
    %2447 = vmatpush1.xpose.msra.mxu0 0.0
    %2448 = vmatprep.subr.mxu0 0.0
    %2449 = vmatpush1.xpose.msra.mxu0 0.0
    %2450 = vmatprep.subr.mxu0 0.0
    %2451 = vmatpush1.xpose.msra.mxu0 0.0
    %2452 = vmatprep.subr.mxu0 0.0
    %2453 = vmatpush1.xpose.msra.mxu0 0.0
    %2454 = vmatprep.subr.mxu0 0.0
    %2455 = vmatpush1.xpose.msra.mxu0 0.0
    %2456 = vmatprep.subr.mxu0 0.0
    %2457 = vmatpush1.xpose.msra.mxu0 0.0
    %2458 = vmatprep.subr.mxu0 0.0
    %2459 = vmatpush1.xpose.msra.mxu0 0.0
    %2460 = vmatprep.mubr.f32.mxu0 0.0
    %2461 = vmatmul.mubr.f32.gmra.mrb[0].mxu0 %v2346
    %v2462 = vpop.f32.mrb[0].mxu0
    %v2463 = vadd.f32 %v2343, %v2462
    %v2464 = vpop.f32.mrb[0].mxu0
    %2465 = vdwg.mxu0
    %2466 = vst [vmem:[#allocation5] sm:$0xff] %v2463
    %v2467 = vxor.u32 %v2463, 2147483648
    %v2468 = vmul.f32 %v2467, 1.442695
    %v2469 = vpow.pop %v2468
    %v2470 = vadd.f32 %v2469, 1.0
    %v2471 = vrcp.pop %v2470
    %v2472 = vmul.f32 1.0, %v2471
    %2473 = vst [vmem:[#allocation7] sm:$0xff] %v2472
    // Predicated region
    $region118: #{tarikgc_forward.1} parent=1 // pred_check
      _
    $region119: #{tarikgc_forward.1} parent=1 // pred_check_branch
      %2475 = sbr.rel (0) target = $region121
    $region120: #{tarikgc_forward.1} parent=1 // pred_region
      %s2477 = ssub.s32 128, 128
      %2478 = vsyncadd [#allocation6], %s2477
      %s2480 = sshll.u32 [#allocation5], 4
      %s2481 = int_to_ptr.vmem [resolvable:$true] %s2480
      %2483 = dma.vmem_to_hbm [thread:$0]  %s2481, 128, %s59, [#allocation6]
    $region121: #{tarikgc_forward.1} parent=1 // pred_fallthru
      _
    // Predicated region
    $region122: #{tarikgc_forward.1} parent=1 // pred_check
      _
    $region123: #{tarikgc_forward.1} parent=1 // pred_check_branch
      %2485 = sbr.rel (0) target = $region125
    $region124: #{tarikgc_forward.1} parent=1 // pred_region
      %s2487 = ssub.s32 128, 128
      %2488 = vsyncadd [#allocation8], %s2487
      %s2490 = sshll.u32 [#allocation7], 4
      %s2491 = int_to_ptr.vmem [resolvable:$true] %s2490
      %2493 = dma.vmem_to_hbm [thread:$0]  %s2491, 128, %s61, [#allocation8]
    $region125: #{tarikgc_forward.1} parent=1 // pred_fallthru
      _
    // Predicated region
    $region126: #{tarikgc_forward.1} parent=1 // pred_check
      _
    $region127: #{tarikgc_forward.1} parent=1 // pred_check_branch
      %2495 = sbr.rel (0) target = $region129
    $region128: #{tarikgc_forward.1} parent=1 // pred_region
      %2496 = dma.done [#allocation6], 128
    $region129: #{tarikgc_forward.1} parent=1 // pred_fallthru
      _
    // Predicated region
    $region130: #{tarikgc_forward.1} parent=1 // pred_check
      _
    $region131: #{tarikgc_forward.1} parent=1 // pred_check_branch
      %2498 = sbr.rel (0) target = $region133
    $region132: #{tarikgc_forward.1} parent=1 // pred_region
      %2499 = dma.done [#allocation8], 128
    $region133: #{tarikgc_forward.1} parent=1 // pred_fallthru
      _
    %2500 = vsyncpa [#allocation6], 1
    %2501 = vsyncpa [#allocation8], 1

</llo_original>
